<compile_context>
chip_gen: v7x
topology: tpu7x:2x2x1
jax: 0.10.0
libtpu: 0.0.40
codegen_flags: <defaults>
</compile_context>

<pallas_src>
import functools

import jax
import jax.numpy as jnp
import numpy as np
from jax import lax
from jax.experimental import pallas as pl
from jax.experimental.pallas import tpu as pltpu


# ------------------------------ fused model kernel ----------------------------
def _make_fused_kernel(Tc, Bp, H, O, n_layers):
    """Kernel over grid=(batch_chunks, time_chunks).

    Inputs (per grid step): x chunk (Tc*Bp, D), layer-0 W_ih/W_hh/b, fused
    [W_ih;W_hh]/b for layers >= 1, head W_fc/b_fc.  Output: (Tc*Bp, O) chunk.
    Scratch: gx slab, top-layer h sequence slab, per-layer h/c state (carried
    across time chunks).
    """
    L = n_layers
    n_waves = Tc + L - 1

    def kernel(*refs):
        x_ref = refs[0]                           # (Tc*Bp, D)
        wih0_ref = refs[1]                        # (D, 4H)
        whh0_ref = refs[2]                        # (H, 4H)
        b0_ref = refs[3]                          # (1, 4H)
        off = 4
        wcat_refs, bL_refs = [], []
        for _ in range(L - 1):
            wcat_refs.append(refs[off]); off += 1  # (2H, 4H) = [W_ih; W_hh]
            bL_refs.append(refs[off]); off += 1    # (1, 4H)
        wfc_ref = refs[off]                       # (H, O)
        bfc_ref = refs[off + 1]                   # (1, O)
        out_ref = refs[off + 2]                   # (Tc*Bp, O)
        gx_ref, hseq_ref, h_ref, c_ref = refs[off + 3: off + 7]

        # Zero recurrent state at the start of every sequence (time chunk 0).
        @pl.when(pl.program_id(1) == 0)
        def _():
            h_ref[...] = jnp.zeros_like(h_ref)
            c_ref[...] = jnp.zeros_like(c_ref)

        # Layer-0 input projection for the WHOLE chunk as one MXU GEMM (+bias).
        gx_ref[...] = (
            jnp.dot(x_ref[...], wih0_ref[...],
                    preferred_element_type=jnp.float32) + b0_ref[...])

        # Hoist weight loads out of the wave loop.
        whh0 = whh0_ref[...]
        wcat = [r[...] for r in wcat_refs]
        bcat = [r[...] for r in bL_refs]

        def wave(w, carry):
            # Snapshot previous-wave hidden states: every layer's matmul in this
            # wave reads only snapshot values -> independent MXU issues.
            h_prev = [h_ref[l] for l in range(L)]
            for l in range(L):
                t_l = w - l                               # local time for layer l
                active = jnp.logical_and(t_l >= 0, t_l < Tc)

                @pl.when(active)
                def _(l=l, t_l=t_l):
                    if l == 0:
                        r = pl.multiple_of(t_l * Bp, Bp)  # 8-aligned sublane offset
                        gates = gx_ref[pl.ds(r, Bp), :] + jnp.dot(
                            h_prev[0], whh0, preferred_element_type=jnp.float32)
                    else:
                        # Fused [h_{l-1}(t); h_l(t-1)] @ [W_ih; W_hh]: one MXU call.
                        hcat = jnp.concatenate([h_prev[l - 1], h_prev[l]], axis=1)
                        gates = jnp.dot(hcat, wcat[l - 1],
                                        preferred_element_type=jnp.float32) + bcat[l - 1]
                    # Two full-vreg EUP ops instead of four quarter-filled ones.
                    sig = jax.nn.sigmoid(gates)
                    tnh = jnp.tanh(gates)
                    i_g = sig[:, 0 * H:1 * H]
                    f_g = sig[:, 1 * H:2 * H]
                    o_g = sig[:, 3 * H:4 * H]
                    g_g = tnh[:, 2 * H:3 * H]
                    c = f_g * c_ref[l] + i_g * g_g
                    h = o_g * jnp.tanh(c)
                    c_ref[l] = c
                    h_ref[l] = h
                    if l == L - 1:                        # only top layer feeds the head
                        r = pl.multiple_of(t_l * Bp, Bp)
                        hseq_ref[pl.ds(r, Bp), :] = h
            return carry

        lax.fori_loop(0, n_waves, wave, 0,
                      unroll=(True if n_waves <= 16 else 8))

        # Fused head: tanh + Conv1d(kernel_size=1) == one (Tc*Bp, H)@(H, O) GEMM.
        y = (jnp.dot(jnp.tanh(hseq_ref[...]), wfc_ref[...],
                     preferred_element_type=jnp.float32) + bfc_ref[...])
        out_ref[...] = y.astype(out_ref.dtype)

    return kernel


# ---------------------------- model wrapper / params --------------------------
def init_params(key, input_dim, hidden_dim, layer_dim, output_dim):
    """Deterministic init mimicking PyTorch's U(-1/sqrt(H), 1/sqrt(H))."""
    keys = jax.random.split(key, 4 * layer_dim + 2)
    k = 1.0 / np.sqrt(hidden_dim)
    lstm = []
    idx = 0
    d_in = input_dim
    for _ in range(layer_dim):
        w_ih = jax.random.uniform(keys[idx], (d_in, 4 * hidden_dim),
                                  jnp.float32, -k, k); idx += 1
        w_hh = jax.random.uniform(keys[idx], (hidden_dim, 4 * hidden_dim),
                                  jnp.float32, -k, k); idx += 1
        b_ih = jax.random.uniform(keys[idx], (1, 4 * hidden_dim),
                                  jnp.float32, -k, k); idx += 1
        b_hh = jax.random.uniform(keys[idx], (1, 4 * hidden_dim),
                                  jnp.float32, -k, k); idx += 1
        lstm.append((w_ih, w_hh, b_ih + b_hh))
        d_in = hidden_dim
    kc = 1.0 / np.sqrt(hidden_dim * 1)   # Conv1d fan_in = hidden_dim * kernel(1)
    fc_w = jax.random.uniform(keys[idx], (hidden_dim, output_dim),
                              jnp.float32, -kc, kc); idx += 1
    fc_b = jax.random.uniform(keys[idx], (1, output_dim),
                              jnp.float32, -kc, kc)
    return {"lstm": lstm, "fc_w": fc_w, "fc_b": fc_b}


def lstm_model_forward(params, x, *, time_chunk=128):
    """x: (B, T, input_dim), batch_first like the PyTorch module.
    Returns (B, T, output_dim)."""
    B, T, D = x.shape
    lstm = params["lstm"]
    L = len(lstm)
    H = lstm[0][1].shape[0]
    O = params["fc_w"].shape[1]

    Bp = 8                                 # sublane-aligned batch tile
    nbc = -(-B // Bp)                      # batch chunks (parallel grid axis)
    Bp_total = nbc * Bp
    Tc = min(time_chunk, T)                # time chunk (bounds VMEM to O(Tc))
    ntc = -(-T // Tc)
    Tp = ntc * Tc

    # Time-major, padded, batch-chunk-major layout: (nbc, Tp*Bp, D).
    x_tm = jnp.transpose(x, (1, 0, 2)).astype(jnp.float32)            # (T, B, D)
    x_tm = jnp.pad(x_tm, ((0, Tp - T), (0, Bp_total - B), (0, 0)))    # (Tp, Bp_total, D)
    x_bm = (x_tm.reshape(Tp, nbc, Bp, D)
                .transpose(1, 0, 2, 3)
                .reshape(nbc, Tp * Bp, D))

    # Parameters: layer 0 keeps W_ih/W_hh separate (input projection hoisted);
    # layers >= 1 get a fused [W_ih; W_hh] so the recurrent step is one matmul.
    w_ih0, w_hh0, b0 = lstm[0]
    flat_params = [w_ih0, w_hh0, b0]
    in_specs = [
        pl.BlockSpec((None, Tc * Bp, D), lambda b, t: (b, t, 0)),
        pl.BlockSpec(w_ih0.shape, lambda b, t: (0, 0)),
        pl.BlockSpec(w_hh0.shape, lambda b, t: (0, 0)),
        pl.BlockSpec(b0.shape, lambda b, t: (0, 0)),
    ]
    for (w_ih, w_hh, bias) in lstm[1:]:
        w_cat = jnp.concatenate([w_ih, w_hh], axis=0)                 # (2H, 4H)
        flat_params += [w_cat, bias]
        in_specs += [pl.BlockSpec(w_cat.shape, lambda b, t: (0, 0)),
                     pl.BlockSpec(bias.shape, lambda b, t: (0, 0))]
    flat_params += [params["fc_w"], params["fc_b"]]
    in_specs += [pl.BlockSpec(params["fc_w"].shape, lambda b, t: (0, 0)),
                 pl.BlockSpec(params["fc_b"].shape, lambda b, t: (0, 0))]

    kernel = _make_fused_kernel(Tc, Bp, H, O, L)

    y_flat = pl.pallas_call(
        kernel,
        out_shape=jax.ShapeDtypeStruct((nbc, Tp * Bp, O), jnp.float32),
        grid_spec=pltpu.PrefetchScalarGridSpec(
            num_scalar_prefetch=0,
            grid=(nbc, ntc),                       # (batch chunks, time chunks)
            in_specs=in_specs,
            out_specs=pl.BlockSpec((None, Tc * Bp, O), lambda b, t: (b, t, 0)),
            scratch_shapes=[
                pltpu.VMEM((Tc * Bp, 4 * H), jnp.float32),   # gate pre-activations (chunk)
                pltpu.VMEM((Tc * Bp, H), jnp.float32),       # top-layer hidden seq (chunk)
                pltpu.VMEM((L, Bp, H), jnp.float32),         # h state (carried across chunks)
                pltpu.VMEM((L, Bp, H), jnp.float32),         # c state (carried across chunks)
            ],
        ),
        compiler_params=pltpu.CompilerParams(
            dimension_semantics=("parallel", "arbitrary"),
            vmem_limit_bytes=60 * 1024 * 1024,
        ),
    )(x_bm, *flat_params)

    y = (y_flat.reshape(nbc, Tp, Bp, O)
               .transpose(1, 0, 2, 3)
               .reshape(Tp, Bp_total, O)[:T, :B, :])          # drop padding
    return jnp.transpose(y, (1, 0, 2))                        # back to (B, T, O)


# ------------------------------ pure-JAX reference -----------------------------
def reference_forward(params, x):
    B, T, D = x.shape
    h_seq = x.astype(jnp.float32)
    for (w_ih, w_hh, b) in params["lstm"]:
        H = w_hh.shape[0]

        def step(carry, x_t):
            h, c = carry
            gates = x_t @ w_ih + h @ w_hh + b
            i = jax.nn.sigmoid(gates[:, :H])
            f = jax.nn.sigmoid(gates[:, H:2 * H])
            g = jnp.tanh(gates[:, 2 * H:3 * H])
            o = jax.nn.sigmoid(gates[:, 3 * H:])
            c = f * c + i * g
            h = o * jnp.tanh(c)
            return (h, c), h

        h0 = jnp.zeros((B, H), jnp.float32)
        (_, _), ys = jax.lax.scan(step, (h0, h0), jnp.transpose(h_seq, (1, 0, 2)))
        h_seq = jnp.transpose(ys, (1, 0, 2))
    return jnp.tanh(h_seq) @ params["fc_w"] + params["fc_b"]


if __name__ == "__main__":
    B, T = 2, 8
    input_dim, hidden_dim, layer_dim, output_dim = 16, 32, 2, 8

    key = jax.random.PRNGKey(0)
    kx, kp = jax.random.split(key)
    x = jax.random.normal(kx, (B, T, input_dim), jnp.float32)
    params = init_params(kp, input_dim, hidden_dim, layer_dim, output_dim)

    # Small time chunk so the chunked-grid / state-carry path is exercised.
    fwd = jax.jit(functools.partial(lstm_model_forward, time_chunk=4))
    out = jax.block_until_ready(fwd(params, x))

    ref = reference_forward(params, x)
    assert out.shape == (B, T, output_dim)
    np.testing.assert_allclose(np.asarray(out), np.asarray(ref),
                               rtol=5e-5, atol=5e-5)
    print("KERNEL_OK")
</pallas_src>

<mosaic_0001>
module attributes {stable_mosaic.version = 11 : i64} {
  func.func @kernel(%arg0: i32, %arg1: i32, %arg2: memref<1x32x16xf32, #tpu.memory_space<vmem>>, %arg3: memref<16x128xf32, #tpu.memory_space<vmem>>, %arg4: memref<32x128xf32, #tpu.memory_space<vmem>>, %arg5: memref<1x128xf32, #tpu.memory_space<vmem>>, %arg6: memref<64x128xf32, #tpu.memory_space<vmem>>, %arg7: memref<1x128xf32, #tpu.memory_space<vmem>>, %arg8: memref<32x8xf32, #tpu.memory_space<vmem>>, %arg9: memref<1x8xf32, #tpu.memory_space<vmem>>, %arg10: memref<1x32x8xf32, #tpu.memory_space<vmem>>, %arg11: memref<32x128xf32, #tpu.memory_space<vmem>>, %arg12: memref<32x32xf32, #tpu.memory_space<vmem>>, %arg13: memref<2x8x32xf32, #tpu.memory_space<vmem>>, %arg14: memref<2x8x32xf32, #tpu.memory_space<vmem>>) attributes {dimension_semantics = [#tpu.dimension_semantics<parallel>, #tpu.dimension_semantics<arbitrary>], iteration_bounds = array<i64: 1, 2>, scalar_prefetch = 0 : i64, scratch_operands = 4 : i64, tpu.core_type = #tpu.core_type<tc>, window_params = [{transform_indices = @transform_0, window_bounds = array<i64: 1, 32, 16>}, {pipeline_mode = #tpu.pipeline_mode<synchronous>, transform_indices = @transform_1, window_bounds = array<i64: 16, 128>}, {pipeline_mode = #tpu.pipeline_mode<synchronous>, transform_indices = @transform_2, window_bounds = array<i64: 32, 128>}, {pipeline_mode = #tpu.pipeline_mode<synchronous>, transform_indices = @transform_3, window_bounds = array<i64: 1, 128>}, {pipeline_mode = #tpu.pipeline_mode<synchronous>, transform_indices = @transform_4, window_bounds = array<i64: 64, 128>}, {pipeline_mode = #tpu.pipeline_mode<synchronous>, transform_indices = @transform_5, window_bounds = array<i64: 1, 128>}, {pipeline_mode = #tpu.pipeline_mode<synchronous>, transform_indices = @transform_6, window_bounds = array<i64: 32, 8>}, {pipeline_mode = #tpu.pipeline_mode<synchronous>, transform_indices = @transform_7, window_bounds = array<i64: 1, 8>}, {transform_indices = @transform_8, window_bounds = array<i64: 1, 32, 8>}]} {
    %c0_i32 = arith.constant 0 : i32
    %0 = arith.cmpi eq, %arg1, %c0_i32 : i32
    %1 = arith.extui %0 : i1 to i32
    %c0_i32_0 = arith.constant 0 : i32
    %2 = arith.cmpi ne, %1, %c0_i32_0 : i32
    scf.if %2 {
      %cst_95 = arith.constant 0.000000e+00 : f32
      %104 = vector.broadcast %cst_95 : f32 to vector<2x8x32xf32>
      %c0_96 = arith.constant 0 : index
      %c0_97 = arith.constant 0 : index
      %c0_98 = arith.constant 0 : index
      %105 = vector.load %arg13[%c0_96, %c0_97, %c0_98] : memref<2x8x32xf32, #tpu.memory_space<vmem>>, vector<2x8x32xf32>
      tpu.vector_store %arg13[%c0_96, %c0_97, %c0_98], %104 {strides = array<i32>} : memref<2x8x32xf32, #tpu.memory_space<vmem>>, vector<2x8x32xf32>,
      %cst_99 = arith.constant 0.000000e+00 : f32
      %106 = vector.broadcast %cst_99 : f32 to vector<2x8x32xf32>
      %c0_100 = arith.constant 0 : index
      %c0_101 = arith.constant 0 : index
      %c0_102 = arith.constant 0 : index
      %107 = vector.load %arg14[%c0_100, %c0_101, %c0_102] : memref<2x8x32xf32, #tpu.memory_space<vmem>>, vector<2x8x32xf32>
      tpu.vector_store %arg14[%c0_100, %c0_101, %c0_102], %106 {strides = array<i32>} : memref<2x8x32xf32, #tpu.memory_space<vmem>>, vector<2x8x32xf32>,
    } else {
    }
    %c0 = arith.constant 0 : index
    %c0_1 = arith.constant 0 : index
    %c0_2 = arith.constant 0 : index
    %3 = vector.load %arg2[%c0, %c0_1, %c0_2] : memref<1x32x16xf32, #tpu.memory_space<vmem>>, vector<1x32x16xf32>
    %4 = vector.shape_cast %3 : vector<1x32x16xf32> to vector<32x16xf32>
    %c0_3 = arith.constant 0 : index
    %c0_4 = arith.constant 0 : index
    %5 = vector.load %arg3[%c0_3, %c0_4] : memref<16x128xf32, #tpu.memory_space<vmem>>, vector<16x128xf32>
    %cst = arith.constant dense<0.000000e+00> : vector<32x128xf32>
    %6 = tpu.matmul %4, %5, %cst {dimension_numbers = #tpu.dot_dimension_numbers<[1], [0], [0], [1], [0, 0, 1, 1], [], []>} : vector<32x16xf32>, vector<16x128xf32>, vector<32x128xf32> -> vector<32x128xf32>
    %c0_5 = arith.constant 0 : index
    %c0_6 = arith.constant 0 : index
    %7 = vector.load %arg5[%c0_5, %c0_6] : memref<1x128xf32, #tpu.memory_space<vmem>>, vector<1x128xf32>
    %8 = vector.broadcast %7 : vector<1x128xf32> to vector<32x128xf32>
    %9 = arith.addf %6, %8 : vector<32x128xf32>
    %c0_7 = arith.constant 0 : index
    %c0_8 = arith.constant 0 : index
    %10 = vector.load %arg11[%c0_7, %c0_8] : memref<32x128xf32, #tpu.memory_space<vmem>>, vector<32x128xf32>
    tpu.vector_store %arg11[%c0_7, %c0_8], %9 {strides = array<i32>} : memref<32x128xf32, #tpu.memory_space<vmem>>, vector<32x128xf32>,
    %c0_9 = arith.constant 0 : index
    %c0_10 = arith.constant 0 : index
    %11 = vector.load %arg4[%c0_9, %c0_10] : memref<32x128xf32, #tpu.memory_space<vmem>>, vector<32x128xf32>
    %c0_11 = arith.constant 0 : index
    %c0_12 = arith.constant 0 : index
    %12 = vector.load %arg6[%c0_11, %c0_12] : memref<64x128xf32, #tpu.memory_space<vmem>>, vector<64x128xf32>
    %c0_13 = arith.constant 0 : index
    %c0_14 = arith.constant 0 : index
    %13 = vector.load %arg7[%c0_13, %c0_14] : memref<1x128xf32, #tpu.memory_space<vmem>>, vector<1x128xf32>
    %c0_i32_15 = arith.constant 0 : i32
    %c0_16 = arith.constant 0 : index
    %c0_17 = arith.constant 0 : index
    %c0_18 = arith.constant 0 : index
    %14 = vector.load %arg13[%c0_16, %c0_17, %c0_18] : memref<2x8x32xf32, #tpu.memory_space<vmem>>, vector<1x8x32xf32>
    %15 = vector.shape_cast %14 : vector<1x8x32xf32> to vector<8x32xf32>
    %c1 = arith.constant 1 : index
    %c0_19 = arith.constant 0 : index
    %c0_20 = arith.constant 0 : index
    %16 = vector.load %arg13[%c1, %c0_19, %c0_20] : memref<2x8x32xf32, #tpu.memory_space<vmem>>, vector<1x8x32xf32>
    %17 = vector.shape_cast %16 : vector<1x8x32xf32> to vector<8x32xf32>
    %c0_i32_21 = arith.constant 0 : i32
    %18 = arith.subi %c0_i32_15, %c0_i32_21 : i32
    %c0_i32_22 = arith.constant 0 : i32
    %19 = arith.cmpi sge, %18, %c0_i32_22 : i32
    %c4_i32 = arith.constant 4 : i32
    %20 = arith.cmpi slt, %18, %c4_i32 : i32
    %21 = arith.andi %19, %20 : i1
    %22 = arith.extui %21 : i1 to i32
    %c0_i32_23 = arith.constant 0 : i32
    %23 = arith.cmpi ne, %22, %c0_i32_23 : i32
    scf.if %23 {
      %c8_i32 = arith.constant 8 : i32
      %104 = arith.muli %18, %c8_i32 : i32
      %105 = tpu.assume_multiple %104, 8 : i32
      %106 = arith.index_cast %105 : i32 to index
      %c0_95 = arith.constant 0 : index
      %107 = vector.load %arg11[%106, %c0_95] : memref<32x128xf32, #tpu.memory_space<vmem>>, vector<8x128xf32>
      %cst_96 = arith.constant dense<0.000000e+00> : vector<8x128xf32>
      %108 = tpu.matmul %15, %11, %cst_96 {dimension_numbers = #tpu.dot_dimension_numbers<[1], [0], [0], [1], [0, 0, 1, 1], [], []>} : vector<8x32xf32>, vector<32x128xf32>, vector<8x128xf32> -> vector<8x128xf32>
      %109 = arith.addf %107, %108 : vector<8x128xf32>
      %110 = arith.negf %109 : vector<8x128xf32>
      %111 = math.exp %110 : vector<8x128xf32>
      %cst_97 = arith.constant 1.000000e+00 : f32
      %112 = vector.broadcast %cst_97 : f32 to vector<8x128xf32>
      %113 = arith.addf %112, %111 : vector<8x128xf32>
      %114 = arith.divf %112, %113 : vector<8x128xf32>
      %115 = math.tanh %109 : vector<8x128xf32>
      %116 = vector.extract_strided_slice %114 {offsets = [0, 0], sizes = [8, 32], strides = [1, 1]} : vector<8x128xf32> to vector<8x32xf32>
      %117 = vector.extract_strided_slice %114 {offsets = [0, 32], sizes = [8, 32], strides = [1, 1]} : vector<8x128xf32> to vector<8x32xf32>
      %118 = vector.extract_strided_slice %114 {offsets = [0, 96], sizes = [8, 32], strides = [1, 1]} : vector<8x128xf32> to vector<8x32xf32>
      %119 = vector.extract_strided_slice %115 {offsets = [0, 64], sizes = [8, 32], strides = [1, 1]} : vector<8x128xf32> to vector<8x32xf32>
      %c0_98 = arith.constant 0 : index
      %c0_99 = arith.constant 0 : index
      %c0_100 = arith.constant 0 : index
      %120 = vector.load %arg14[%c0_98, %c0_99, %c0_100] : memref<2x8x32xf32, #tpu.memory_space<vmem>>, vector<1x8x32xf32>
      %121 = vector.shape_cast %120 : vector<1x8x32xf32> to vector<8x32xf32>
      %122 = arith.mulf %117, %121 : vector<8x32xf32>
      %123 = arith.mulf %116, %119 : vector<8x32xf32>
      %124 = arith.addf %122, %123 : vector<8x32xf32>
      %125 = math.tanh %124 : vector<8x32xf32>
      %126 = arith.mulf %118, %125 : vector<8x32xf32>
      %c0_101 = arith.constant 0 : index
      %c0_102 = arith.constant 0 : index
      %c0_103 = arith.constant 0 : index
      %127 = vector.load %arg14[%c0_101, %c0_102, %c0_103] : memref<2x8x32xf32, #tpu.memory_space<vmem>>, vector<1x8x32xf32>
      %128 = vector.shape_cast %127 : vector<1x8x32xf32> to vector<8x32xf32>
      %129 = vector.shape_cast %124 : vector<8x32xf32> to vector<1x8x32xf32>
      tpu.vector_store %arg14[%c0_101, %c0_102, %c0_103], %129 {strides = array<i32>} : memref<2x8x32xf32, #tpu.memory_space<vmem>>, vector<1x8x32xf32>,
      %c0_104 = arith.constant 0 : index
      %c0_105 = arith.constant 0 : index
      %c0_106 = arith.constant 0 : index
      %130 = vector.load %arg13[%c0_104, %c0_105, %c0_106] : memref<2x8x32xf32, #tpu.memory_space<vmem>>, vector<1x8x32xf32>
      %131 = vector.shape_cast %130 : vector<1x8x32xf32> to vector<8x32xf32>
      %132 = vector.shape_cast %126 : vector<8x32xf32> to vector<1x8x32xf32>
      tpu.vector_store %arg13[%c0_104, %c0_105, %c0_106], %132 {strides = array<i32>} : memref<2x8x32xf32, #tpu.memory_space<vmem>>, vector<1x8x32xf32>,
    } else {
    }
    %c1_i32 = arith.constant 1 : i32
    %24 = arith.subi %c0_i32_15, %c1_i32 : i32
    %c0_i32_24 = arith.constant 0 : i32
    %25 = arith.cmpi sge, %24, %c0_i32_24 : i32
    %c4_i32_25 = arith.constant 4 : i32
    %26 = arith.cmpi slt, %24, %c4_i32_25 : i32
    %27 = arith.andi %25, %26 : i1
    %28 = arith.extui %27 : i1 to i32
    %c0_i32_26 = arith.constant 0 : i32
    %29 = arith.cmpi ne, %28, %c0_i32_26 : i32
    scf.if %29 {
      %104 = tpu.concatenate %15, %17 in 1 : vector<8x32xf32>, vector<8x32xf32> -> vector<8x64xf32>
      %cst_95 = arith.constant dense<0.000000e+00> : vector<8x128xf32>
      %105 = tpu.matmul %104, %12, %cst_95 {dimension_numbers = #tpu.dot_dimension_numbers<[1], [0], [0], [1], [0, 0, 1, 1], [], []>} : vector<8x64xf32>, vector<64x128xf32>, vector<8x128xf32> -> vector<8x128xf32>
      %106 = vector.broadcast %13 : vector<1x128xf32> to vector<8x128xf32>
      %107 = arith.addf %105, %106 : vector<8x128xf32>
      %108 = arith.negf %107 : vector<8x128xf32>
      %109 = math.exp %108 : vector<8x128xf32>
      %cst_96 = arith.constant 1.000000e+00 : f32
      %110 = vector.broadcast %cst_96 : f32 to vector<8x128xf32>
      %111 = arith.addf %110, %109 : vector<8x128xf32>
      %112 = arith.divf %110, %111 : vector<8x128xf32>
      %113 = math.tanh %107 : vector<8x128xf32>
      %114 = vector.extract_strided_slice %112 {offsets = [0, 0], sizes = [8, 32], strides = [1, 1]} : vector<8x128xf32> to vector<8x32xf32>
      %115 = vector.extract_strided_slice %112 {offsets = [0, 32], sizes = [8, 32], strides = [1, 1]} : vector<8x128xf32> to vector<8x32xf32>
      %116 = vector.extract_strided_slice %112 {offsets = [0, 96], sizes = [8, 32], strides = [1, 1]} : vector<8x128xf32> to vector<8x32xf32>
      %117 = vector.extract_strided_slice %113 {offsets = [0, 64], sizes = [8, 32], strides = [1, 1]} : vector<8x128xf32> to vector<8x32xf32>
      %c1_97 = arith.constant 1 : index
      %c0_98 = arith.constant 0 : index
      %c0_99 = arith.constant 0 : index
      %118 = vector.load %arg14[%c1_97, %c0_98, %c0_99] : memref<2x8x32xf32, #tpu.memory_space<vmem>>, vector<1x8x32xf32>
      %119 = vector.shape_cast %118 : vector<1x8x32xf32> to vector<8x32xf32>
      %120 = arith.mulf %115, %119 : vector<8x32xf32>
      %121 = arith.mulf %114, %117 : vector<8x32xf32>
      %122 = arith.addf %120, %121 : vector<8x32xf32>
      %123 = math.tanh %122 : vector<8x32xf32>
      %124 = arith.mulf %116, %123 : vector<8x32xf32>
      %c1_100 = arith.constant 1 : index
      %c0_101 = arith.constant 0 : index
      %c0_102 = arith.constant 0 : index
      %125 = vector.load %arg14[%c1_100, %c0_101, %c0_102] : memref<2x8x32xf32, #tpu.memory_space<vmem>>, vector<1x8x32xf32>
      %126 = vector.shape_cast %125 : vector<1x8x32xf32> to vector<8x32xf32>
      %127 = vector.shape_cast %122 : vector<8x32xf32> to vector<1x8x32xf32>
      tpu.vector_store %arg14[%c1_100, %c0_101, %c0_102], %127 {strides = array<i32>} : memref<2x8x32xf32, #tpu.memory_space<vmem>>, vector<1x8x32xf32>,
      %c1_103 = arith.constant 1 : index
      %c0_104 = arith.constant 0 : index
      %c0_105 = arith.constant 0 : index
      %128 = vector.load %arg13[%c1_103, %c0_104, %c0_105] : memref<2x8x32xf32, #tpu.memory_space<vmem>>, vector<1x8x32xf32>
      %129 = vector.shape_cast %128 : vector<1x8x32xf32> to vector<8x32xf32>
      %130 = vector.shape_cast %124 : vector<8x32xf32> to vector<1x8x32xf32>
      tpu.vector_store %arg13[%c1_103, %c0_104, %c0_105], %130 {strides = array<i32>} : memref<2x8x32xf32, #tpu.memory_space<vmem>>, vector<1x8x32xf32>,
      %c8_i32 = arith.constant 8 : i32
      %131 = arith.muli %24, %c8_i32 : i32
      %132 = tpu.assume_multiple %131, 8 : i32
      %133 = arith.index_cast %132 : i32 to index
      %c0_106 = arith.constant 0 : index
      %134 = vector.load %arg12[%133, %c0_106] : memref<32x32xf32, #tpu.memory_space<vmem>>, vector<8x32xf32>
      tpu.vector_store %arg12[%133, %c0_106], %124 {strides = array<i32>} : memref<32x32xf32, #tpu.memory_space<vmem>>, vector<8x32xf32>,
    } else {
    }
    %c1_i32_27 = arith.constant 1 : i32
    %c0_28 = arith.constant 0 : index
    %c0_29 = arith.constant 0 : index
    %c0_30 = arith.constant 0 : index
    %30 = vector.load %arg13[%c0_28, %c0_29, %c0_30] : memref<2x8x32xf32, #tpu.memory_space<vmem>>, vector<1x8x32xf32>
    %31 = vector.shape_cast %30 : vector<1x8x32xf32> to vector<8x32xf32>
    %c1_31 = arith.constant 1 : index
    %c0_32 = arith.constant 0 : index
    %c0_33 = arith.constant 0 : index
    %32 = vector.load %arg13[%c1_31, %c0_32, %c0_33] : memref<2x8x32xf32, #tpu.memory_space<vmem>>, vector<1x8x32xf32>
    %33 = vector.shape_cast %32 : vector<1x8x32xf32> to vector<8x32xf32>
    %c0_i32_34 = arith.constant 0 : i32
    %34 = arith.subi %c1_i32_27, %c0_i32_34 : i32
    %c0_i32_35 = arith.constant 0 : i32
    %35 = arith.cmpi sge, %34, %c0_i32_35 : i32
    %c4_i32_36 = arith.constant 4 : i32
    %36 = arith.cmpi slt, %34, %c4_i32_36 : i32
    %37 = arith.andi %35, %36 : i1
    %38 = arith.extui %37 : i1 to i32
    %c0_i32_37 = arith.constant 0 : i32
    %39 = arith.cmpi ne, %38, %c0_i32_37 : i32
    scf.if %39 {
      %c8_i32 = arith.constant 8 : i32
      %104 = arith.muli %34, %c8_i32 : i32
      %105 = tpu.assume_multiple %104, 8 : i32
      %106 = arith.index_cast %105 : i32 to index
      %c0_95 = arith.constant 0 : index
      %107 = vector.load %arg11[%106, %c0_95] : memref<32x128xf32, #tpu.memory_space<vmem>>, vector<8x128xf32>
      %cst_96 = arith.constant dense<0.000000e+00> : vector<8x128xf32>
      %108 = tpu.matmul %31, %11, %cst_96 {dimension_numbers = #tpu.dot_dimension_numbers<[1], [0], [0], [1], [0, 0, 1, 1], [], []>} : vector<8x32xf32>, vector<32x128xf32>, vector<8x128xf32> -> vector<8x128xf32>
      %109 = arith.addf %107, %108 : vector<8x128xf32>
      %110 = arith.negf %109 : vector<8x128xf32>
      %111 = math.exp %110 : vector<8x128xf32>
      %cst_97 = arith.constant 1.000000e+00 : f32
      %112 = vector.broadcast %cst_97 : f32 to vector<8x128xf32>
      %113 = arith.addf %112, %111 : vector<8x128xf32>
      %114 = arith.divf %112, %113 : vector<8x128xf32>
      %115 = math.tanh %109 : vector<8x128xf32>
      %116 = vector.extract_strided_slice %114 {offsets = [0, 0], sizes = [8, 32], strides = [1, 1]} : vector<8x128xf32> to vector<8x32xf32>
      %117 = vector.extract_strided_slice %114 {offsets = [0, 32], sizes = [8, 32], strides = [1, 1]} : vector<8x128xf32> to vector<8x32xf32>
      %118 = vector.extract_strided_slice %114 {offsets = [0, 96], sizes = [8, 32], strides = [1, 1]} : vector<8x128xf32> to vector<8x32xf32>
      %119 = vector.extract_strided_slice %115 {offsets = [0, 64], sizes = [8, 32], strides = [1, 1]} : vector<8x128xf32> to vector<8x32xf32>
      %c0_98 = arith.constant 0 : index
      %c0_99 = arith.constant 0 : index
      %c0_100 = arith.constant 0 : index
      %120 = vector.load %arg14[%c0_98, %c0_99, %c0_100] : memref<2x8x32xf32, #tpu.memory_space<vmem>>, vector<1x8x32xf32>
      %121 = vector.shape_cast %120 : vector<1x8x32xf32> to vector<8x32xf32>
      %122 = arith.mulf %117, %121 : vector<8x32xf32>
      %123 = arith.mulf %116, %119 : vector<8x32xf32>
      %124 = arith.addf %122, %123 : vector<8x32xf32>
      %125 = math.tanh %124 : vector<8x32xf32>
      %126 = arith.mulf %118, %125 : vector<8x32xf32>
      %c0_101 = arith.constant 0 : index
      %c0_102 = arith.constant 0 : index
      %c0_103 = arith.constant 0 : index
      %127 = vector.load %arg14[%c0_101, %c0_102, %c0_103] : memref<2x8x32xf32, #tpu.memory_space<vmem>>, vector<1x8x32xf32>
      %128 = vector.shape_cast %127 : vector<1x8x32xf32> to vector<8x32xf32>
      %129 = vector.shape_cast %124 : vector<8x32xf32> to vector<1x8x32xf32>
      tpu.vector_store %arg14[%c0_101, %c0_102, %c0_103], %129 {strides = array<i32>} : memref<2x8x32xf32, #tpu.memory_space<vmem>>, vector<1x8x32xf32>,
      %c0_104 = arith.constant 0 : index
      %c0_105 = arith.constant 0 : index
      %c0_106 = arith.constant 0 : index
      %130 = vector.load %arg13[%c0_104, %c0_105, %c0_106] : memref<2x8x32xf32, #tpu.memory_space<vmem>>, vector<1x8x32xf32>
      %131 = vector.shape_cast %130 : vector<1x8x32xf32> to vector<8x32xf32>
      %132 = vector.shape_cast %126 : vector<8x32xf32> to vector<1x8x32xf32>
      tpu.vector_store %arg13[%c0_104, %c0_105, %c0_106], %132 {strides = array<i32>} : memref<2x8x32xf32, #tpu.memory_space<vmem>>, vector<1x8x32xf32>,
    } else {
    }
    %c1_i32_38 = arith.constant 1 : i32
    %40 = arith.subi %c1_i32_27, %c1_i32_38 : i32
    %c0_i32_39 = arith.constant 0 : i32
    %41 = arith.cmpi sge, %40, %c0_i32_39 : i32
    %c4_i32_40 = arith.constant 4 : i32
    %42 = arith.cmpi slt, %40, %c4_i32_40 : i32
    %43 = arith.andi %41, %42 : i1
    %44 = arith.extui %43 : i1 to i32
    %c0_i32_41 = arith.constant 0 : i32
    %45 = arith.cmpi ne, %44, %c0_i32_41 : i32
    scf.if %45 {
      %104 = tpu.concatenate %31, %33 in 1 : vector<8x32xf32>, vector<8x32xf32> -> vector<8x64xf32>
      %cst_95 = arith.constant dense<0.000000e+00> : vector<8x128xf32>
      %105 = tpu.matmul %104, %12, %cst_95 {dimension_numbers = #tpu.dot_dimension_numbers<[1], [0], [0], [1], [0, 0, 1, 1], [], []>} : vector<8x64xf32>, vector<64x128xf32>, vector<8x128xf32> -> vector<8x128xf32>
      %106 = vector.broadcast %13 : vector<1x128xf32> to vector<8x128xf32>
      %107 = arith.addf %105, %106 : vector<8x128xf32>
      %108 = arith.negf %107 : vector<8x128xf32>
      %109 = math.exp %108 : vector<8x128xf32>
      %cst_96 = arith.constant 1.000000e+00 : f32
      %110 = vector.broadcast %cst_96 : f32 to vector<8x128xf32>
      %111 = arith.addf %110, %109 : vector<8x128xf32>
      %112 = arith.divf %110, %111 : vector<8x128xf32>
      %113 = math.tanh %107 : vector<8x128xf32>
      %114 = vector.extract_strided_slice %112 {offsets = [0, 0], sizes = [8, 32], strides = [1, 1]} : vector<8x128xf32> to vector<8x32xf32>
      %115 = vector.extract_strided_slice %112 {offsets = [0, 32], sizes = [8, 32], strides = [1, 1]} : vector<8x128xf32> to vector<8x32xf32>
      %116 = vector.extract_strided_slice %112 {offsets = [0, 96], sizes = [8, 32], strides = [1, 1]} : vector<8x128xf32> to vector<8x32xf32>
      %117 = vector.extract_strided_slice %113 {offsets = [0, 64], sizes = [8, 32], strides = [1, 1]} : vector<8x128xf32> to vector<8x32xf32>
      %c1_97 = arith.constant 1 : index
      %c0_98 = arith.constant 0 : index
      %c0_99 = arith.constant 0 : index
      %118 = vector.load %arg14[%c1_97, %c0_98, %c0_99] : memref<2x8x32xf32, #tpu.memory_space<vmem>>, vector<1x8x32xf32>
      %119 = vector.shape_cast %118 : vector<1x8x32xf32> to vector<8x32xf32>
      %120 = arith.mulf %115, %119 : vector<8x32xf32>
      %121 = arith.mulf %114, %117 : vector<8x32xf32>
      %122 = arith.addf %120, %121 : vector<8x32xf32>
      %123 = math.tanh %122 : vector<8x32xf32>
      %124 = arith.mulf %116, %123 : vector<8x32xf32>
      %c1_100 = arith.constant 1 : index
      %c0_101 = arith.constant 0 : index
      %c0_102 = arith.constant 0 : index
      %125 = vector.load %arg14[%c1_100, %c0_101, %c0_102] : memref<2x8x32xf32, #tpu.memory_space<vmem>>, vector<1x8x32xf32>
      %126 = vector.shape_cast %125 : vector<1x8x32xf32> to vector<8x32xf32>
      %127 = vector.shape_cast %122 : vector<8x32xf32> to vector<1x8x32xf32>
      tpu.vector_store %arg14[%c1_100, %c0_101, %c0_102], %127 {strides = array<i32>} : memref<2x8x32xf32, #tpu.memory_space<vmem>>, vector<1x8x32xf32>,
      %c1_103 = arith.constant 1 : index
      %c0_104 = arith.constant 0 : index
      %c0_105 = arith.constant 0 : index
      %128 = vector.load %arg13[%c1_103, %c0_104, %c0_105] : memref<2x8x32xf32, #tpu.memory_space<vmem>>, vector<1x8x32xf32>
      %129 = vector.shape_cast %128 : vector<1x8x32xf32> to vector<8x32xf32>
      %130 = vector.shape_cast %124 : vector<8x32xf32> to vector<1x8x32xf32>
      tpu.vector_store %arg13[%c1_103, %c0_104, %c0_105], %130 {strides = array<i32>} : memref<2x8x32xf32, #tpu.memory_space<vmem>>, vector<1x8x32xf32>,
      %c8_i32 = arith.constant 8 : i32
      %131 = arith.muli %40, %c8_i32 : i32
      %132 = tpu.assume_multiple %131, 8 : i32
      %133 = arith.index_cast %132 : i32 to index
      %c0_106 = arith.constant 0 : index
      %134 = vector.load %arg12[%133, %c0_106] : memref<32x32xf32, #tpu.memory_space<vmem>>, vector<8x32xf32>
      tpu.vector_store %arg12[%133, %c0_106], %124 {strides = array<i32>} : memref<32x32xf32, #tpu.memory_space<vmem>>, vector<8x32xf32>,
    } else {
    }
    %c2_i32 = arith.constant 2 : i32
    %c0_42 = arith.constant 0 : index
    %c0_43 = arith.constant 0 : index
    %c0_44 = arith.constant 0 : index
    %46 = vector.load %arg13[%c0_42, %c0_43, %c0_44] : memref<2x8x32xf32, #tpu.memory_space<vmem>>, vector<1x8x32xf32>
    %47 = vector.shape_cast %46 : vector<1x8x32xf32> to vector<8x32xf32>
    %c1_45 = arith.constant 1 : index
    %c0_46 = arith.constant 0 : index
    %c0_47 = arith.constant 0 : index
    %48 = vector.load %arg13[%c1_45, %c0_46, %c0_47] : memref<2x8x32xf32, #tpu.memory_space<vmem>>, vector<1x8x32xf32>
    %49 = vector.shape_cast %48 : vector<1x8x32xf32> to vector<8x32xf32>
    %c0_i32_48 = arith.constant 0 : i32
    %50 = arith.subi %c2_i32, %c0_i32_48 : i32
    %c0_i32_49 = arith.constant 0 : i32
    %51 = arith.cmpi sge, %50, %c0_i32_49 : i32
    %c4_i32_50 = arith.constant 4 : i32
    %52 = arith.cmpi slt, %50, %c4_i32_50 : i32
    %53 = arith.andi %51, %52 : i1
    %54 = arith.extui %53 : i1 to i32
    %c0_i32_51 = arith.constant 0 : i32
    %55 = arith.cmpi ne, %54, %c0_i32_51 : i32
    scf.if %55 {
      %c8_i32 = arith.constant 8 : i32
      %104 = arith.muli %50, %c8_i32 : i32
      %105 = tpu.assume_multiple %104, 8 : i32
      %106 = arith.index_cast %105 : i32 to index
      %c0_95 = arith.constant 0 : index
      %107 = vector.load %arg11[%106, %c0_95] : memref<32x128xf32, #tpu.memory_space<vmem>>, vector<8x128xf32>
      %cst_96 = arith.constant dense<0.000000e+00> : vector<8x128xf32>
      %108 = tpu.matmul %47, %11, %cst_96 {dimension_numbers = #tpu.dot_dimension_numbers<[1], [0], [0], [1], [0, 0, 1, 1], [], []>} : vector<8x32xf32>, vector<32x128xf32>, vector<8x128xf32> -> vector<8x128xf32>
      %109 = arith.addf %107, %108 : vector<8x128xf32>
      %110 = arith.negf %109 : vector<8x128xf32>
      %111 = math.exp %110 : vector<8x128xf32>
      %cst_97 = arith.constant 1.000000e+00 : f32
      %112 = vector.broadcast %cst_97 : f32 to vector<8x128xf32>
      %113 = arith.addf %112, %111 : vector<8x128xf32>
      %114 = arith.divf %112, %113 : vector<8x128xf32>
      %115 = math.tanh %109 : vector<8x128xf32>
      %116 = vector.extract_strided_slice %114 {offsets = [0, 0], sizes = [8, 32], strides = [1, 1]} : vector<8x128xf32> to vector<8x32xf32>
      %117 = vector.extract_strided_slice %114 {offsets = [0, 32], sizes = [8, 32], strides = [1, 1]} : vector<8x128xf32> to vector<8x32xf32>
      %118 = vector.extract_strided_slice %114 {offsets = [0, 96], sizes = [8, 32], strides = [1, 1]} : vector<8x128xf32> to vector<8x32xf32>
      %119 = vector.extract_strided_slice %115 {offsets = [0, 64], sizes = [8, 32], strides = [1, 1]} : vector<8x128xf32> to vector<8x32xf32>
      %c0_98 = arith.constant 0 : index
      %c0_99 = arith.constant 0 : index
      %c0_100 = arith.constant 0 : index
      %120 = vector.load %arg14[%c0_98, %c0_99, %c0_100] : memref<2x8x32xf32, #tpu.memory_space<vmem>>, vector<1x8x32xf32>
      %121 = vector.shape_cast %120 : vector<1x8x32xf32> to vector<8x32xf32>
      %122 = arith.mulf %117, %121 : vector<8x32xf32>
      %123 = arith.mulf %116, %119 : vector<8x32xf32>
      %124 = arith.addf %122, %123 : vector<8x32xf32>
      %125 = math.tanh %124 : vector<8x32xf32>
      %126 = arith.mulf %118, %125 : vector<8x32xf32>
      %c0_101 = arith.constant 0 : index
      %c0_102 = arith.constant 0 : index
      %c0_103 = arith.constant 0 : index
      %127 = vector.load %arg14[%c0_101, %c0_102, %c0_103] : memref<2x8x32xf32, #tpu.memory_space<vmem>>, vector<1x8x32xf32>
      %128 = vector.shape_cast %127 : vector<1x8x32xf32> to vector<8x32xf32>
      %129 = vector.shape_cast %124 : vector<8x32xf32> to vector<1x8x32xf32>
      tpu.vector_store %arg14[%c0_101, %c0_102, %c0_103], %129 {strides = array<i32>} : memref<2x8x32xf32, #tpu.memory_space<vmem>>, vector<1x8x32xf32>,
      %c0_104 = arith.constant 0 : index
      %c0_105 = arith.constant 0 : index
      %c0_106 = arith.constant 0 : index
      %130 = vector.load %arg13[%c0_104, %c0_105, %c0_106] : memref<2x8x32xf32, #tpu.memory_space<vmem>>, vector<1x8x32xf32>
      %131 = vector.shape_cast %130 : vector<1x8x32xf32> to vector<8x32xf32>
      %132 = vector.shape_cast %126 : vector<8x32xf32> to vector<1x8x32xf32>
      tpu.vector_store %arg13[%c0_104, %c0_105, %c0_106], %132 {strides = array<i32>} : memref<2x8x32xf32, #tpu.memory_space<vmem>>, vector<1x8x32xf32>,
    } else {
    }
    %c1_i32_52 = arith.constant 1 : i32
    %56 = arith.subi %c2_i32, %c1_i32_52 : i32
    %c0_i32_53 = arith.constant 0 : i32
    %57 = arith.cmpi sge, %56, %c0_i32_53 : i32
    %c4_i32_54 = arith.constant 4 : i32
    %58 = arith.cmpi slt, %56, %c4_i32_54 : i32
    %59 = arith.andi %57, %58 : i1
    %60 = arith.extui %59 : i1 to i32
    %c0_i32_55 = arith.constant 0 : i32
    %61 = arith.cmpi ne, %60, %c0_i32_55 : i32
    scf.if %61 {
      %104 = tpu.concatenate %47, %49 in 1 : vector<8x32xf32>, vector<8x32xf32> -> vector<8x64xf32>
      %cst_95 = arith.constant dense<0.000000e+00> : vector<8x128xf32>
      %105 = tpu.matmul %104, %12, %cst_95 {dimension_numbers = #tpu.dot_dimension_numbers<[1], [0], [0], [1], [0, 0, 1, 1], [], []>} : vector<8x64xf32>, vector<64x128xf32>, vector<8x128xf32> -> vector<8x128xf32>
      %106 = vector.broadcast %13 : vector<1x128xf32> to vector<8x128xf32>
      %107 = arith.addf %105, %106 : vector<8x128xf32>
      %108 = arith.negf %107 : vector<8x128xf32>
      %109 = math.exp %108 : vector<8x128xf32>
      %cst_96 = arith.constant 1.000000e+00 : f32
      %110 = vector.broadcast %cst_96 : f32 to vector<8x128xf32>
      %111 = arith.addf %110, %109 : vector<8x128xf32>
      %112 = arith.divf %110, %111 : vector<8x128xf32>
      %113 = math.tanh %107 : vector<8x128xf32>
      %114 = vector.extract_strided_slice %112 {offsets = [0, 0], sizes = [8, 32], strides = [1, 1]} : vector<8x128xf32> to vector<8x32xf32>
      %115 = vector.extract_strided_slice %112 {offsets = [0, 32], sizes = [8, 32], strides = [1, 1]} : vector<8x128xf32> to vector<8x32xf32>
      %116 = vector.extract_strided_slice %112 {offsets = [0, 96], sizes = [8, 32], strides = [1, 1]} : vector<8x128xf32> to vector<8x32xf32>
      %117 = vector.extract_strided_slice %113 {offsets = [0, 64], sizes = [8, 32], strides = [1, 1]} : vector<8x128xf32> to vector<8x32xf32>
      %c1_97 = arith.constant 1 : index
      %c0_98 = arith.constant 0 : index
      %c0_99 = arith.constant 0 : index
      %118 = vector.load %arg14[%c1_97, %c0_98, %c0_99] : memref<2x8x32xf32, #tpu.memory_space<vmem>>, vector<1x8x32xf32>
      %119 = vector.shape_cast %118 : vector<1x8x32xf32> to vector<8x32xf32>
      %120 = arith.mulf %115, %119 : vector<8x32xf32>
      %121 = arith.mulf %114, %117 : vector<8x32xf32>
      %122 = arith.addf %120, %121 : vector<8x32xf32>
      %123 = math.tanh %122 : vector<8x32xf32>
      %124 = arith.mulf %116, %123 : vector<8x32xf32>
      %c1_100 = arith.constant 1 : index
      %c0_101 = arith.constant 0 : index
      %c0_102 = arith.constant 0 : index
      %125 = vector.load %arg14[%c1_100, %c0_101, %c0_102] : memref<2x8x32xf32, #tpu.memory_space<vmem>>, vector<1x8x32xf32>
      %126 = vector.shape_cast %125 : vector<1x8x32xf32> to vector<8x32xf32>
      %127 = vector.shape_cast %122 : vector<8x32xf32> to vector<1x8x32xf32>
      tpu.vector_store %arg14[%c1_100, %c0_101, %c0_102], %127 {strides = array<i32>} : memref<2x8x32xf32, #tpu.memory_space<vmem>>, vector<1x8x32xf32>,
      %c1_103 = arith.constant 1 : index
      %c0_104 = arith.constant 0 : index
      %c0_105 = arith.constant 0 : index
      %128 = vector.load %arg13[%c1_103, %c0_104, %c0_105] : memref<2x8x32xf32, #tpu.memory_space<vmem>>, vector<1x8x32xf32>
      %129 = vector.shape_cast %128 : vector<1x8x32xf32> to vector<8x32xf32>
      %130 = vector.shape_cast %124 : vector<8x32xf32> to vector<1x8x32xf32>
      tpu.vector_store %arg13[%c1_103, %c0_104, %c0_105], %130 {strides = array<i32>} : memref<2x8x32xf32, #tpu.memory_space<vmem>>, vector<1x8x32xf32>,
      %c8_i32 = arith.constant 8 : i32
      %131 = arith.muli %56, %c8_i32 : i32
      %132 = tpu.assume_multiple %131, 8 : i32
      %133 = arith.index_cast %132 : i32 to index
      %c0_106 = arith.constant 0 : index
      %134 = vector.load %arg12[%133, %c0_106] : memref<32x32xf32, #tpu.memory_space<vmem>>, vector<8x32xf32>
      tpu.vector_store %arg12[%133, %c0_106], %124 {strides = array<i32>} : memref<32x32xf32, #tpu.memory_space<vmem>>, vector<8x32xf32>,
    } else {
    }
    %c3_i32 = arith.constant 3 : i32
    %c0_56 = arith.constant 0 : index
    %c0_57 = arith.constant 0 : index
    %c0_58 = arith.constant 0 : index
    %62 = vector.load %arg13[%c0_56, %c0_57, %c0_58] : memref<2x8x32xf32, #tpu.memory_space<vmem>>, vector<1x8x32xf32>
    %63 = vector.shape_cast %62 : vector<1x8x32xf32> to vector<8x32xf32>
    %c1_59 = arith.constant 1 : index
    %c0_60 = arith.constant 0 : index
    %c0_61 = arith.constant 0 : index
    %64 = vector.load %arg13[%c1_59, %c0_60, %c0_61] : memref<2x8x32xf32, #tpu.memory_space<vmem>>, vector<1x8x32xf32>
    %65 = vector.shape_cast %64 : vector<1x8x32xf32> to vector<8x32xf32>
    %c0_i32_62 = arith.constant 0 : i32
    %66 = arith.subi %c3_i32, %c0_i32_62 : i32
    %c0_i32_63 = arith.constant 0 : i32
    %67 = arith.cmpi sge, %66, %c0_i32_63 : i32
    %c4_i32_64 = arith.constant 4 : i32
    %68 = arith.cmpi slt, %66, %c4_i32_64 : i32
    %69 = arith.andi %67, %68 : i1
    %70 = arith.extui %69 : i1 to i32
    %c0_i32_65 = arith.constant 0 : i32
    %71 = arith.cmpi ne, %70, %c0_i32_65 : i32
    scf.if %71 {
      %c8_i32 = arith.constant 8 : i32
      %104 = arith.muli %66, %c8_i32 : i32
      %105 = tpu.assume_multiple %104, 8 : i32
      %106 = arith.index_cast %105 : i32 to index
      %c0_95 = arith.constant 0 : index
      %107 = vector.load %arg11[%106, %c0_95] : memref<32x128xf32, #tpu.memory_space<vmem>>, vector<8x128xf32>
      %cst_96 = arith.constant dense<0.000000e+00> : vector<8x128xf32>
      %108 = tpu.matmul %63, %11, %cst_96 {dimension_numbers = #tpu.dot_dimension_numbers<[1], [0], [0], [1], [0, 0, 1, 1], [], []>} : vector<8x32xf32>, vector<32x128xf32>, vector<8x128xf32> -> vector<8x128xf32>
      %109 = arith.addf %107, %108 : vector<8x128xf32>
      %110 = arith.negf %109 : vector<8x128xf32>
      %111 = math.exp %110 : vector<8x128xf32>
      %cst_97 = arith.constant 1.000000e+00 : f32
      %112 = vector.broadcast %cst_97 : f32 to vector<8x128xf32>
      %113 = arith.addf %112, %111 : vector<8x128xf32>
      %114 = arith.divf %112, %113 : vector<8x128xf32>
      %115 = math.tanh %109 : vector<8x128xf32>
      %116 = vector.extract_strided_slice %114 {offsets = [0, 0], sizes = [8, 32], strides = [1, 1]} : vector<8x128xf32> to vector<8x32xf32>
      %117 = vector.extract_strided_slice %114 {offsets = [0, 32], sizes = [8, 32], strides = [1, 1]} : vector<8x128xf32> to vector<8x32xf32>
      %118 = vector.extract_strided_slice %114 {offsets = [0, 96], sizes = [8, 32], strides = [1, 1]} : vector<8x128xf32> to vector<8x32xf32>
      %119 = vector.extract_strided_slice %115 {offsets = [0, 64], sizes = [8, 32], strides = [1, 1]} : vector<8x128xf32> to vector<8x32xf32>
      %c0_98 = arith.constant 0 : index
      %c0_99 = arith.constant 0 : index
      %c0_100 = arith.constant 0 : index
      %120 = vector.load %arg14[%c0_98, %c0_99, %c0_100] : memref<2x8x32xf32, #tpu.memory_space<vmem>>, vector<1x8x32xf32>
      %121 = vector.shape_cast %120 : vector<1x8x32xf32> to vector<8x32xf32>
      %122 = arith.mulf %117, %121 : vector<8x32xf32>
      %123 = arith.mulf %116, %119 : vector<8x32xf32>
      %124 = arith.addf %122, %123 : vector<8x32xf32>
      %125 = math.tanh %124 : vector<8x32xf32>
      %126 = arith.mulf %118, %125 : vector<8x32xf32>
      %c0_101 = arith.constant 0 : index
      %c0_102 = arith.constant 0 : index
      %c0_103 = arith.constant 0 : index
      %127 = vector.load %arg14[%c0_101, %c0_102, %c0_103] : memref<2x8x32xf32, #tpu.memory_space<vmem>>, vector<1x8x32xf32>
      %128 = vector.shape_cast %127 : vector<1x8x32xf32> to vector<8x32xf32>
      %129 = vector.shape_cast %124 : vector<8x32xf32> to vector<1x8x32xf32>
      tpu.vector_store %arg14[%c0_101, %c0_102, %c0_103], %129 {strides = array<i32>} : memref<2x8x32xf32, #tpu.memory_space<vmem>>, vector<1x8x32xf32>,
      %c0_104 = arith.constant 0 : index
      %c0_105 = arith.constant 0 : index
      %c0_106 = arith.constant 0 : index
      %130 = vector.load %arg13[%c0_104, %c0_105, %c0_106] : memref<2x8x32xf32, #tpu.memory_space<vmem>>, vector<1x8x32xf32>
      %131 = vector.shape_cast %130 : vector<1x8x32xf32> to vector<8x32xf32>
      %132 = vector.shape_cast %126 : vector<8x32xf32> to vector<1x8x32xf32>
      tpu.vector_store %arg13[%c0_104, %c0_105, %c0_106], %132 {strides = array<i32>} : memref<2x8x32xf32, #tpu.memory_space<vmem>>, vector<1x8x32xf32>,
    } else {
    }
    %c1_i32_66 = arith.constant 1 : i32
    %72 = arith.subi %c3_i32, %c1_i32_66 : i32
    %c0_i32_67 = arith.constant 0 : i32
    %73 = arith.cmpi sge, %72, %c0_i32_67 : i32
    %c4_i32_68 = arith.constant 4 : i32
    %74 = arith.cmpi slt, %72, %c4_i32_68 : i32
    %75 = arith.andi %73, %74 : i1
    %76 = arith.extui %75 : i1 to i32
    %c0_i32_69 = arith.constant 0 : i32
    %77 = arith.cmpi ne, %76, %c0_i32_69 : i32
    scf.if %77 {
      %104 = tpu.concatenate %63, %65 in 1 : vector<8x32xf32>, vector<8x32xf32> -> vector<8x64xf32>
      %cst_95 = arith.constant dense<0.000000e+00> : vector<8x128xf32>
      %105 = tpu.matmul %104, %12, %cst_95 {dimension_numbers = #tpu.dot_dimension_numbers<[1], [0], [0], [1], [0, 0, 1, 1], [], []>} : vector<8x64xf32>, vector<64x128xf32>, vector<8x128xf32> -> vector<8x128xf32>
      %106 = vector.broadcast %13 : vector<1x128xf32> to vector<8x128xf32>
      %107 = arith.addf %105, %106 : vector<8x128xf32>
      %108 = arith.negf %107 : vector<8x128xf32>
      %109 = math.exp %108 : vector<8x128xf32>
      %cst_96 = arith.constant 1.000000e+00 : f32
      %110 = vector.broadcast %cst_96 : f32 to vector<8x128xf32>
      %111 = arith.addf %110, %109 : vector<8x128xf32>
      %112 = arith.divf %110, %111 : vector<8x128xf32>
      %113 = math.tanh %107 : vector<8x128xf32>
      %114 = vector.extract_strided_slice %112 {offsets = [0, 0], sizes = [8, 32], strides = [1, 1]} : vector<8x128xf32> to vector<8x32xf32>
      %115 = vector.extract_strided_slice %112 {offsets = [0, 32], sizes = [8, 32], strides = [1, 1]} : vector<8x128xf32> to vector<8x32xf32>
      %116 = vector.extract_strided_slice %112 {offsets = [0, 96], sizes = [8, 32], strides = [1, 1]} : vector<8x128xf32> to vector<8x32xf32>
      %117 = vector.extract_strided_slice %113 {offsets = [0, 64], sizes = [8, 32], strides = [1, 1]} : vector<8x128xf32> to vector<8x32xf32>
      %c1_97 = arith.constant 1 : index
      %c0_98 = arith.constant 0 : index
      %c0_99 = arith.constant 0 : index
      %118 = vector.load %arg14[%c1_97, %c0_98, %c0_99] : memref<2x8x32xf32, #tpu.memory_space<vmem>>, vector<1x8x32xf32>
      %119 = vector.shape_cast %118 : vector<1x8x32xf32> to vector<8x32xf32>
      %120 = arith.mulf %115, %119 : vector<8x32xf32>
      %121 = arith.mulf %114, %117 : vector<8x32xf32>
      %122 = arith.addf %120, %121 : vector<8x32xf32>
      %123 = math.tanh %122 : vector<8x32xf32>
      %124 = arith.mulf %116, %123 : vector<8x32xf32>
      %c1_100 = arith.constant 1 : index
      %c0_101 = arith.constant 0 : index
      %c0_102 = arith.constant 0 : index
      %125 = vector.load %arg14[%c1_100, %c0_101, %c0_102] : memref<2x8x32xf32, #tpu.memory_space<vmem>>, vector<1x8x32xf32>
      %126 = vector.shape_cast %125 : vector<1x8x32xf32> to vector<8x32xf32>
      %127 = vector.shape_cast %122 : vector<8x32xf32> to vector<1x8x32xf32>
      tpu.vector_store %arg14[%c1_100, %c0_101, %c0_102], %127 {strides = array<i32>} : memref<2x8x32xf32, #tpu.memory_space<vmem>>, vector<1x8x32xf32>,
      %c1_103 = arith.constant 1 : index
      %c0_104 = arith.constant 0 : index
      %c0_105 = arith.constant 0 : index
      %128 = vector.load %arg13[%c1_103, %c0_104, %c0_105] : memref<2x8x32xf32, #tpu.memory_space<vmem>>, vector<1x8x32xf32>
      %129 = vector.shape_cast %128 : vector<1x8x32xf32> to vector<8x32xf32>
      %130 = vector.shape_cast %124 : vector<8x32xf32> to vector<1x8x32xf32>
      tpu.vector_store %arg13[%c1_103, %c0_104, %c0_105], %130 {strides = array<i32>} : memref<2x8x32xf32, #tpu.memory_space<vmem>>, vector<1x8x32xf32>,
      %c8_i32 = arith.constant 8 : i32
      %131 = arith.muli %72, %c8_i32 : i32
      %132 = tpu.assume_multiple %131, 8 : i32
      %133 = arith.index_cast %132 : i32 to index
      %c0_106 = arith.constant 0 : index
      %134 = vector.load %arg12[%133, %c0_106] : memref<32x32xf32, #tpu.memory_space<vmem>>, vector<8x32xf32>
      tpu.vector_store %arg12[%133, %c0_106], %124 {strides = array<i32>} : memref<32x32xf32, #tpu.memory_space<vmem>>, vector<8x32xf32>,
    } else {
    }
    %c4_i32_70 = arith.constant 4 : i32
    %c0_71 = arith.constant 0 : index
    %c0_72 = arith.constant 0 : index
    %c0_73 = arith.constant 0 : index
    %78 = vector.load %arg13[%c0_71, %c0_72, %c0_73] : memref<2x8x32xf32, #tpu.memory_space<vmem>>, vector<1x8x32xf32>
    %79 = vector.shape_cast %78 : vector<1x8x32xf32> to vector<8x32xf32>
    %c1_74 = arith.constant 1 : index
    %c0_75 = arith.constant 0 : index
    %c0_76 = arith.constant 0 : index
    %80 = vector.load %arg13[%c1_74, %c0_75, %c0_76] : memref<2x8x32xf32, #tpu.memory_space<vmem>>, vector<1x8x32xf32>
    %81 = vector.shape_cast %80 : vector<1x8x32xf32> to vector<8x32xf32>
    %c0_i32_77 = arith.constant 0 : i32
    %82 = arith.subi %c4_i32_70, %c0_i32_77 : i32
    %c0_i32_78 = arith.constant 0 : i32
    %83 = arith.cmpi sge, %82, %c0_i32_78 : i32
    %c4_i32_79 = arith.constant 4 : i32
    %84 = arith.cmpi slt, %82, %c4_i32_79 : i32
    %85 = arith.andi %83, %84 : i1
    %86 = arith.extui %85 : i1 to i32
    %c0_i32_80 = arith.constant 0 : i32
    %87 = arith.cmpi ne, %86, %c0_i32_80 : i32
    scf.if %87 {
      %c8_i32 = arith.constant 8 : i32
      %104 = arith.muli %82, %c8_i32 : i32
      %105 = tpu.assume_multiple %104, 8 : i32
      %106 = arith.index_cast %105 : i32 to index
      %c0_95 = arith.constant 0 : index
      %107 = vector.load %arg11[%106, %c0_95] : memref<32x128xf32, #tpu.memory_space<vmem>>, vector<8x128xf32>
      %cst_96 = arith.constant dense<0.000000e+00> : vector<8x128xf32>
      %108 = tpu.matmul %79, %11, %cst_96 {dimension_numbers = #tpu.dot_dimension_numbers<[1], [0], [0], [1], [0, 0, 1, 1], [], []>} : vector<8x32xf32>, vector<32x128xf32>, vector<8x128xf32> -> vector<8x128xf32>
      %109 = arith.addf %107, %108 : vector<8x128xf32>
      %110 = arith.negf %109 : vector<8x128xf32>
      %111 = math.exp %110 : vector<8x128xf32>
      %cst_97 = arith.constant 1.000000e+00 : f32
      %112 = vector.broadcast %cst_97 : f32 to vector<8x128xf32>
      %113 = arith.addf %112, %111 : vector<8x128xf32>
      %114 = arith.divf %112, %113 : vector<8x128xf32>
      %115 = math.tanh %109 : vector<8x128xf32>
      %116 = vector.extract_strided_slice %114 {offsets = [0, 0], sizes = [8, 32], strides = [1, 1]} : vector<8x128xf32> to vector<8x32xf32>
      %117 = vector.extract_strided_slice %114 {offsets = [0, 32], sizes = [8, 32], strides = [1, 1]} : vector<8x128xf32> to vector<8x32xf32>
      %118 = vector.extract_strided_slice %114 {offsets = [0, 96], sizes = [8, 32], strides = [1, 1]} : vector<8x128xf32> to vector<8x32xf32>
      %119 = vector.extract_strided_slice %115 {offsets = [0, 64], sizes = [8, 32], strides = [1, 1]} : vector<8x128xf32> to vector<8x32xf32>
      %c0_98 = arith.constant 0 : index
      %c0_99 = arith.constant 0 : index
      %c0_100 = arith.constant 0 : index
      %120 = vector.load %arg14[%c0_98, %c0_99, %c0_100] : memref<2x8x32xf32, #tpu.memory_space<vmem>>, vector<1x8x32xf32>
      %121 = vector.shape_cast %120 : vector<1x8x32xf32> to vector<8x32xf32>
      %122 = arith.mulf %117, %121 : vector<8x32xf32>
      %123 = arith.mulf %116, %119 : vector<8x32xf32>
      %124 = arith.addf %122, %123 : vector<8x32xf32>
      %125 = math.tanh %124 : vector<8x32xf32>
      %126 = arith.mulf %118, %125 : vector<8x32xf32>
      %c0_101 = arith.constant 0 : index
      %c0_102 = arith.constant 0 : index
      %c0_103 = arith.constant 0 : index
      %127 = vector.load %arg14[%c0_101, %c0_102, %c0_103] : memref<2x8x32xf32, #tpu.memory_space<vmem>>, vector<1x8x32xf32>
      %128 = vector.shape_cast %127 : vector<1x8x32xf32> to vector<8x32xf32>
      %129 = vector.shape_cast %124 : vector<8x32xf32> to vector<1x8x32xf32>
      tpu.vector_store %arg14[%c0_101, %c0_102, %c0_103], %129 {strides = array<i32>} : memref<2x8x32xf32, #tpu.memory_space<vmem>>, vector<1x8x32xf32>,
      %c0_104 = arith.constant 0 : index
      %c0_105 = arith.constant 0 : index
      %c0_106 = arith.constant 0 : index
      %130 = vector.load %arg13[%c0_104, %c0_105, %c0_106] : memref<2x8x32xf32, #tpu.memory_space<vmem>>, vector<1x8x32xf32>
      %131 = vector.shape_cast %130 : vector<1x8x32xf32> to vector<8x32xf32>
      %132 = vector.shape_cast %126 : vector<8x32xf32> to vector<1x8x32xf32>
      tpu.vector_store %arg13[%c0_104, %c0_105, %c0_106], %132 {strides = array<i32>} : memref<2x8x32xf32, #tpu.memory_space<vmem>>, vector<1x8x32xf32>,
    } else {
    }
    %c1_i32_81 = arith.constant 1 : i32
    %88 = arith.subi %c4_i32_70, %c1_i32_81 : i32
    %c0_i32_82 = arith.constant 0 : i32
    %89 = arith.cmpi sge, %88, %c0_i32_82 : i32
    %c4_i32_83 = arith.constant 4 : i32
    %90 = arith.cmpi slt, %88, %c4_i32_83 : i32
    %91 = arith.andi %89, %90 : i1
    %92 = arith.extui %91 : i1 to i32
    %c0_i32_84 = arith.constant 0 : i32
    %93 = arith.cmpi ne, %92, %c0_i32_84 : i32
    scf.if %93 {
      %104 = tpu.concatenate %79, %81 in 1 : vector<8x32xf32>, vector<8x32xf32> -> vector<8x64xf32>
      %cst_95 = arith.constant dense<0.000000e+00> : vector<8x128xf32>
      %105 = tpu.matmul %104, %12, %cst_95 {dimension_numbers = #tpu.dot_dimension_numbers<[1], [0], [0], [1], [0, 0, 1, 1], [], []>} : vector<8x64xf32>, vector<64x128xf32>, vector<8x128xf32> -> vector<8x128xf32>
      %106 = vector.broadcast %13 : vector<1x128xf32> to vector<8x128xf32>
      %107 = arith.addf %105, %106 : vector<8x128xf32>
      %108 = arith.negf %107 : vector<8x128xf32>
      %109 = math.exp %108 : vector<8x128xf32>
      %cst_96 = arith.constant 1.000000e+00 : f32
      %110 = vector.broadcast %cst_96 : f32 to vector<8x128xf32>
      %111 = arith.addf %110, %109 : vector<8x128xf32>
      %112 = arith.divf %110, %111 : vector<8x128xf32>
      %113 = math.tanh %107 : vector<8x128xf32>
      %114 = vector.extract_strided_slice %112 {offsets = [0, 0], sizes = [8, 32], strides = [1, 1]} : vector<8x128xf32> to vector<8x32xf32>
      %115 = vector.extract_strided_slice %112 {offsets = [0, 32], sizes = [8, 32], strides = [1, 1]} : vector<8x128xf32> to vector<8x32xf32>
      %116 = vector.extract_strided_slice %112 {offsets = [0, 96], sizes = [8, 32], strides = [1, 1]} : vector<8x128xf32> to vector<8x32xf32>
      %117 = vector.extract_strided_slice %113 {offsets = [0, 64], sizes = [8, 32], strides = [1, 1]} : vector<8x128xf32> to vector<8x32xf32>
      %c1_97 = arith.constant 1 : index
      %c0_98 = arith.constant 0 : index
      %c0_99 = arith.constant 0 : index
      %118 = vector.load %arg14[%c1_97, %c0_98, %c0_99] : memref<2x8x32xf32, #tpu.memory_space<vmem>>, vector<1x8x32xf32>
      %119 = vector.shape_cast %118 : vector<1x8x32xf32> to vector<8x32xf32>
      %120 = arith.mulf %115, %119 : vector<8x32xf32>
      %121 = arith.mulf %114, %117 : vector<8x32xf32>
      %122 = arith.addf %120, %121 : vector<8x32xf32>
      %123 = math.tanh %122 : vector<8x32xf32>
      %124 = arith.mulf %116, %123 : vector<8x32xf32>
      %c1_100 = arith.constant 1 : index
      %c0_101 = arith.constant 0 : index
      %c0_102 = arith.constant 0 : index
      %125 = vector.load %arg14[%c1_100, %c0_101, %c0_102] : memref<2x8x32xf32, #tpu.memory_space<vmem>>, vector<1x8x32xf32>
      %126 = vector.shape_cast %125 : vector<1x8x32xf32> to vector<8x32xf32>
      %127 = vector.shape_cast %122 : vector<8x32xf32> to vector<1x8x32xf32>
      tpu.vector_store %arg14[%c1_100, %c0_101, %c0_102], %127 {strides = array<i32>} : memref<2x8x32xf32, #tpu.memory_space<vmem>>, vector<1x8x32xf32>,
      %c1_103 = arith.constant 1 : index
      %c0_104 = arith.constant 0 : index
      %c0_105 = arith.constant 0 : index
      %128 = vector.load %arg13[%c1_103, %c0_104, %c0_105] : memref<2x8x32xf32, #tpu.memory_space<vmem>>, vector<1x8x32xf32>
      %129 = vector.shape_cast %128 : vector<1x8x32xf32> to vector<8x32xf32>
      %130 = vector.shape_cast %124 : vector<8x32xf32> to vector<1x8x32xf32>
      tpu.vector_store %arg13[%c1_103, %c0_104, %c0_105], %130 {strides = array<i32>} : memref<2x8x32xf32, #tpu.memory_space<vmem>>, vector<1x8x32xf32>,
      %c8_i32 = arith.constant 8 : i32
      %131 = arith.muli %88, %c8_i32 : i32
      %132 = tpu.assume_multiple %131, 8 : i32
      %133 = arith.index_cast %132 : i32 to index
      %c0_106 = arith.constant 0 : index
      %134 = vector.load %arg12[%133, %c0_106] : memref<32x32xf32, #tpu.memory_space<vmem>>, vector<8x32xf32>
      tpu.vector_store %arg12[%133, %c0_106], %124 {strides = array<i32>} : memref<32x32xf32, #tpu.memory_space<vmem>>, vector<8x32xf32>,
    } else {
    }
    %c5_i32 = arith.constant 5 : i32
    %c0_85 = arith.constant 0 : index
    %c0_86 = arith.constant 0 : index
    %94 = vector.load %arg12[%c0_85, %c0_86] : memref<32x32xf32, #tpu.memory_space<vmem>>, vector<32x32xf32>
    %95 = math.tanh %94 : vector<32x32xf32>
    %c0_87 = arith.constant 0 : index
    %c0_88 = arith.constant 0 : index
    %96 = vector.load %arg8[%c0_87, %c0_88] : memref<32x8xf32, #tpu.memory_space<vmem>>, vector<32x8xf32>
    %cst_89 = arith.constant dense<0.000000e+00> : vector<32x8xf32>
    %97 = tpu.matmul %95, %96, %cst_89 {dimension_numbers = #tpu.dot_dimension_numbers<[1], [0], [0], [1], [0, 0, 1, 1], [], []>} : vector<32x32xf32>, vector<32x8xf32>, vector<32x8xf32> -> vector<32x8xf32>
    %c0_90 = arith.constant 0 : index
    %c0_91 = arith.constant 0 : index
    %98 = vector.load %arg9[%c0_90, %c0_91] : memref<1x8xf32, #tpu.memory_space<vmem>>, vector<1x8xf32>
    %99 = vector.broadcast %98 : vector<1x8xf32> to vector<32x8xf32>
    %100 = arith.addf %97, %99 : vector<32x8xf32>
    %c0_92 = arith.constant 0 : index
    %c0_93 = arith.constant 0 : index
    %c0_94 = arith.constant 0 : index
    %101 = vector.load %arg10[%c0_92, %c0_93, %c0_94] : memref<1x32x8xf32, #tpu.memory_space<vmem>>, vector<1x32x8xf32>
    %102 = vector.shape_cast %101 : vector<1x32x8xf32> to vector<32x8xf32>
    %103 = vector.shape_cast %100 : vector<32x8xf32> to vector<1x32x8xf32>
    tpu.vector_store %arg10[%c0_92, %c0_93, %c0_94], %103 {strides = array<i32>} : memref<1x32x8xf32, #tpu.memory_space<vmem>>, vector<1x32x8xf32>,
    return
  }
  func.func @transform_0(%arg0: i32, %arg1: i32) -> (i32, i32, i32) {
    %c0_i32 = arith.constant 0 : i32
    %c0_i32_0 = arith.constant 0 : i32
    return %arg0, %arg1, %c0_i32 : i32, i32, i32
  }
  func.func @transform_1(%arg0: i32, %arg1: i32) -> (i32, i32) {
    %c0_i32 = arith.constant 0 : i32
    %c0_i32_0 = arith.constant 0 : i32
    %c0_i32_1 = arith.constant 0 : i32
    return %c0_i32, %c0_i32_0 : i32, i32
  }
  func.func @transform_2(%arg0: i32, %arg1: i32) -> (i32, i32) {
    %c0_i32 = arith.constant 0 : i32
    %c0_i32_0 = arith.constant 0 : i32
    %c0_i32_1 = arith.constant 0 : i32
    return %c0_i32, %c0_i32_0 : i32, i32
  }
  func.func @transform_3(%arg0: i32, %arg1: i32) -> (i32, i32) {
    %c0_i32 = arith.constant 0 : i32
    %c0_i32_0 = arith.constant 0 : i32
    %c0_i32_1 = arith.constant 0 : i32
    return %c0_i32, %c0_i32_0 : i32, i32
  }
  func.func @transform_4(%arg0: i32, %arg1: i32) -> (i32, i32) {
    %c0_i32 = arith.constant 0 : i32
    %c0_i32_0 = arith.constant 0 : i32
    %c0_i32_1 = arith.constant 0 : i32
    return %c0_i32, %c0_i32_0 : i32, i32
  }
  func.func @transform_5(%arg0: i32, %arg1: i32) -> (i32, i32) {
    %c0_i32 = arith.constant 0 : i32
    %c0_i32_0 = arith.constant 0 : i32
    %c0_i32_1 = arith.constant 0 : i32
    return %c0_i32, %c0_i32_0 : i32, i32
  }
  func.func @transform_6(%arg0: i32, %arg1: i32) -> (i32, i32) {
    %c0_i32 = arith.constant 0 : i32
    %c0_i32_0 = arith.constant 0 : i32
    %c0_i32_1 = arith.constant 0 : i32
    return %c0_i32, %c0_i32_0 : i32, i32
  }
  func.func @transform_7(%arg0: i32, %arg1: i32) -> (i32, i32) {
    %c0_i32 = arith.constant 0 : i32
    %c0_i32_0 = arith.constant 0 : i32
    %c0_i32_1 = arith.constant 0 : i32
    return %c0_i32, %c0_i32_0 : i32, i32
  }
  func.func @transform_8(%arg0: i32, %arg1: i32) -> (i32, i32, i32) {
    %c0_i32 = arith.constant 0 : i32
    %c0_i32_0 = arith.constant 0 : i32
    return %arg0, %arg1, %c0_i32 : i32, i32, i32
  }
}

</mosaic_0001>

<llo_original>
// kernel: lstm_model_forward.1
$region0: #{lstm_model_forward.1}
  #allocation0 [shape = 'u32[]', space=smem, size = 0x4, offset = 0x4, fixed_abs, tag = 'smem constant byte address 0x4 - core index']
  #allocation1 [shape = 'u32[144,128]{1,0:T(1,128)}', space=vmem, size = 0x12000, scoped, tag = 'internal scratch']
  #allocation2 [shape = 'f32[32,128]{1,0:T(8,128)}', space=vmem, size = 0x4000, scoped, tag = 'scratch operand']
  #allocation3 [shape = 'f32[32,32]{1,0:T(8,128)}', space=vmem, size = 0x4000, scoped, tag = 'scratch operand']
  #allocation4 [shape = 'f32[2,8,32]{2,1,0:T(8,128)}', space=vmem, size = 0x2000, scoped, tag = 'scratch operand']
  #allocation5 [shape = 'f32[2,8,32]{2,1,0:T(8,128)}', space=vmem, size = 0x2000, scoped, tag = 'scratch operand']
  %s0 = inlined_call_operand.vmem [shape: f32[1,64,16], index: 0, kind: input, shape index: {}]
  %s1 = inlined_call_operand.vmem [shape: f32[16,128], index: 1, kind: input, shape index: {}]
  %s2 = inlined_call_operand.vmem [shape: f32[32,128], index: 2, kind: input, shape index: {}]
  %s3 = inlined_call_operand.vmem [shape: f32[1,128], index: 3, kind: input, shape index: {}]
  %s4 = inlined_call_operand.vmem [shape: f32[64,128], index: 4, kind: input, shape index: {}]
  %s5 = inlined_call_operand.vmem [shape: f32[1,128], index: 5, kind: input, shape index: {}]
  %s6 = inlined_call_operand.vmem [shape: f32[32,8], index: 6, kind: input, shape index: {}]
  %s7 = inlined_call_operand.vmem [shape: f32[1,8], index: 7, kind: input, shape index: {}]
  %s8 = inlined_call_operand.vmem [shape: f32[1,64,8], index: 8, kind: output, shape index: {}]
  %s9 = sld [smem:[#allocation0]]
  $region69: #{lstm_model_forward.1} parent=0
    _
  %s11 = ssub.s32 1, %s9
  %s12 = scalar_select 0, %s11, %s9
  loop: start=0, step=1, limit=4
  $region2: #{lstm_model_forward.1} parent=0 // loop_pre_header
    _
  $region3: #{lstm_model_forward.1} parent=0 // loop_header
    %s14 = sphi 0, %s18
    %p15 = scmp.ge.s32.totalorder %s14, 4
    %s21 = sphi 0, %s33
    %s22 = sphi 0, %s29
    %s23 = sphi 0, %s21
    %s24 = sphi 0, %s22
    %s25 = sphi 0, %s23
    %s26 = sphi 0, %s24
    %s38 = sphi 0, %s40
    %s41 = sphi 0, %s38
    %s42 = sphi 0, %s41
    %s58 = sphi 0, %s42
    %s62 = sphi 0, %s62
    %s64 = sphi 0, %s62
    %s65 = sphi 0, %s64
    %s79 = sphi 0, %s65
    %s83 = sphi 0, %s83
    %s85 = sphi 0, %s83
    %s86 = sphi 0, %s85
    %s100 = sphi 0, %s86
    %s104 = sphi 0, %s104
    %s106 = sphi 0, %s104
    %s107 = sphi 0, %s106
    %s121 = sphi 0, %s107
    %s125 = sphi 0, %s125
    %s127 = sphi 0, %s125
    %s128 = sphi 0, %s127
    %s142 = sphi 0, %s128
    %s146 = sphi 0, %s146
    %s148 = sphi 0, %s146
    %s149 = sphi 0, %s148
    %s163 = sphi 0, %s149
    %s167 = sphi 0, %s167
    %s169 = sphi 0, %s167
    %s170 = sphi 0, %s169
    %s184 = sphi 0, %s170
    %s188 = sphi 0, %s188
    %s190 = sphi 0, %s188
    %s191 = sphi 0, %s190
    %s205 = sphi 0, %s191
    %s213 = sphi 0, %s215
    %s216 = sphi 0, %s213
    %s217 = sphi 0, %s216
    %s233 = sphi 0, %s217
  $region4: #{lstm_model_forward.1} parent=0 // loop_header_branch
    %17 = sbr.rel (%p15) target = $region8
  $region5: #{lstm_model_forward.1} parent=0 // loop_body
    %s19 = ssub.s32 %s14, 1
    %s20 = ssub.s32 %s14, 2
    %s27 = sadd.s32 1, %s22
    %p28 = scmp.ge.s32.totalorder %s27, 2
    %s29 = scalar_select %p28, 0, %s27
    %s30 = sadd.s32 1, %s21
    %s31 = scalar_select %p28, %s30, %s21
    %p32 = scmp.ge.s32.totalorder %s31, 1
    %s33 = scalar_select %p32, 0, %s31
    %s34 = ssub.s32 %s21, %s33
    %s35 = ssub.s32 %s22, %s29
    %s36 = sor.u32 %s34, %s35
    %p37 = scmp.eq.s32.totalorder %s36, 0
    %s39 = sadd.s32 %s38, 1
    %s40 = scalar_select %p37, %s38, %s39
    %p43 = pneg %p37
    %p44 = scmp.eq.s32.totalorder %s14, 1
    %p45 = por %p43, %p44
    %p46 = scmp.ne.s32.totalorder %s38, %s41
    %p47 = scmp.eq.s32.totalorder %s14, 0
    %p48 = por %p46, %p47
    %p49 = scmp.ne.s32.totalorder %s38, %s41
    %p50 = scmp.eq.s32.totalorder %s19, 1
    %p51 = por %p49, %p50
    %p52 = scmp.ne.s32.totalorder %s41, %s42
    %p53 = scmp.eq.s32.totalorder %s19, 0
    %p54 = por %p52, %p53
    %p55 = scmp.ne.s32.totalorder %s41, %s42
    %p56 = scmp.eq.s32.totalorder %s20, 1
    %p57 = por %p55, %p56
    %p59 = scmp.ne.s32.totalorder %s42, %s58
    %p60 = scmp.eq.s32.totalorder %s20, 0
    %p61 = por %p59, %p60
    %s63 = sadd.s32 %s62, 1
    %p66 = scmp.eq.s32.totalorder %s14, 1
    %p67 = scmp.ne.s32.totalorder %s62, %s64
    %p68 = scmp.eq.s32.totalorder %s14, 0
    %p69 = por %p67, %p68
    %p70 = scmp.ne.s32.totalorder %s62, %s64
    %p71 = scmp.eq.s32.totalorder %s19, 1
    %p72 = por %p70, %p71
    %p73 = scmp.ne.s32.totalorder %s64, %s65
    %p74 = scmp.eq.s32.totalorder %s19, 0
    %p75 = por %p73, %p74
    %p76 = scmp.ne.s32.totalorder %s64, %s65
    %p77 = scmp.eq.s32.totalorder %s20, 1
    %p78 = por %p76, %p77
    %p80 = scmp.ne.s32.totalorder %s65, %s79
    %p81 = scmp.eq.s32.totalorder %s20, 0
    %p82 = por %p80, %p81
    %s84 = sadd.s32 %s83, 1
    %p87 = scmp.eq.s32.totalorder %s14, 1
    %p88 = scmp.ne.s32.totalorder %s83, %s85
    %p89 = scmp.eq.s32.totalorder %s14, 0
    %p90 = por %p88, %p89
    %p91 = scmp.ne.s32.totalorder %s83, %s85
    %p92 = scmp.eq.s32.totalorder %s19, 1
    %p93 = por %p91, %p92
    %p94 = scmp.ne.s32.totalorder %s85, %s86
    %p95 = scmp.eq.s32.totalorder %s19, 0
    %p96 = por %p94, %p95
    %p97 = scmp.ne.s32.totalorder %s85, %s86
    %p98 = scmp.eq.s32.totalorder %s20, 1
    %p99 = por %p97, %p98
    %p101 = scmp.ne.s32.totalorder %s86, %s100
    %p102 = scmp.eq.s32.totalorder %s20, 0
    %p103 = por %p101, %p102
    %s105 = sadd.s32 %s104, 1
    %p108 = scmp.eq.s32.totalorder %s14, 1
    %p109 = scmp.ne.s32.totalorder %s104, %s106
    %p110 = scmp.eq.s32.totalorder %s14, 0
    %p111 = por %p109, %p110
    %p112 = scmp.ne.s32.totalorder %s104, %s106
    %p113 = scmp.eq.s32.totalorder %s19, 1
    %p114 = por %p112, %p113
    %p115 = scmp.ne.s32.totalorder %s106, %s107
    %p116 = scmp.eq.s32.totalorder %s19, 0
    %p117 = por %p115, %p116
    %p118 = scmp.ne.s32.totalorder %s106, %s107
    %p119 = scmp.eq.s32.totalorder %s20, 1
    %p120 = por %p118, %p119
    %p122 = scmp.ne.s32.totalorder %s107, %s121
    %p123 = scmp.eq.s32.totalorder %s20, 0
    %p124 = por %p122, %p123
    %s126 = sadd.s32 %s125, 1
    %p129 = scmp.eq.s32.totalorder %s14, 1
    %p130 = scmp.ne.s32.totalorder %s125, %s127
    %p131 = scmp.eq.s32.totalorder %s14, 0
    %p132 = por %p130, %p131
    %p133 = scmp.ne.s32.totalorder %s125, %s127
    %p134 = scmp.eq.s32.totalorder %s19, 1
    %p135 = por %p133, %p134
    %p136 = scmp.ne.s32.totalorder %s127, %s128
    %p137 = scmp.eq.s32.totalorder %s19, 0
    %p138 = por %p136, %p137
    %p139 = scmp.ne.s32.totalorder %s127, %s128
    %p140 = scmp.eq.s32.totalorder %s20, 1
    %p141 = por %p139, %p140
    %p143 = scmp.ne.s32.totalorder %s128, %s142
    %p144 = scmp.eq.s32.totalorder %s20, 0
    %p145 = por %p143, %p144
    %s147 = sadd.s32 %s146, 1
    %p150 = scmp.eq.s32.totalorder %s14, 1
    %p151 = scmp.ne.s32.totalorder %s146, %s148
    %p152 = scmp.eq.s32.totalorder %s14, 0
    %p153 = por %p151, %p152
    %p154 = scmp.ne.s32.totalorder %s146, %s148
    %p155 = scmp.eq.s32.totalorder %s19, 1
    %p156 = por %p154, %p155
    %p157 = scmp.ne.s32.totalorder %s148, %s149
    %p158 = scmp.eq.s32.totalorder %s19, 0
    %p159 = por %p157, %p158
    %p160 = scmp.ne.s32.totalorder %s148, %s149
    %p161 = scmp.eq.s32.totalorder %s20, 1
    %p162 = por %p160, %p161
    %p164 = scmp.ne.s32.totalorder %s149, %s163
    %p165 = scmp.eq.s32.totalorder %s20, 0
    %p166 = por %p164, %p165
    %s168 = sadd.s32 %s167, 1
    %p171 = scmp.eq.s32.totalorder %s14, 1
    %p172 = scmp.ne.s32.totalorder %s167, %s169
    %p173 = scmp.eq.s32.totalorder %s14, 0
    %p174 = por %p172, %p173
    %p175 = scmp.ne.s32.totalorder %s167, %s169
    %p176 = scmp.eq.s32.totalorder %s19, 1
    %p177 = por %p175, %p176
    %p178 = scmp.ne.s32.totalorder %s169, %s170
    %p179 = scmp.eq.s32.totalorder %s19, 0
    %p180 = por %p178, %p179
    %p181 = scmp.ne.s32.totalorder %s169, %s170
    %p182 = scmp.eq.s32.totalorder %s20, 1
    %p183 = por %p181, %p182
    %p185 = scmp.ne.s32.totalorder %s170, %s184
    %p186 = scmp.eq.s32.totalorder %s20, 0
    %p187 = por %p185, %p186
    %s189 = sadd.s32 %s188, 1
    %p192 = scmp.eq.s32.totalorder %s14, 1
    %p193 = scmp.ne.s32.totalorder %s188, %s190
    %p194 = scmp.eq.s32.totalorder %s14, 0
    %p195 = por %p193, %p194
    %p196 = scmp.ne.s32.totalorder %s188, %s190
    %p197 = scmp.eq.s32.totalorder %s19, 1
    %p198 = por %p196, %p197
    %p199 = scmp.ne.s32.totalorder %s190, %s191
    %p200 = scmp.eq.s32.totalorder %s19, 0
    %p201 = por %p199, %p200
    %p202 = scmp.ne.s32.totalorder %s190, %s191
    %p203 = scmp.eq.s32.totalorder %s20, 1
    %p204 = por %p202, %p203
    %p206 = scmp.ne.s32.totalorder %s191, %s205
    %p207 = scmp.eq.s32.totalorder %s20, 0
    %p208 = por %p206, %p207
    %s209 = ssub.s32 %s21, %s33
    %s210 = ssub.s32 %s22, %s29
    %s211 = sor.u32 %s209, %s210
    %p212 = scmp.eq.s32.totalorder %s211, 0
    %s214 = sadd.s32 %s213, 1
    %s215 = scalar_select %p212, %s213, %s214
    %p218 = pneg %p212
    %p219 = scmp.eq.s32.totalorder %s14, 1
    %p220 = por %p218, %p219
    %p221 = scmp.ne.s32.totalorder %s213, %s216
    %p222 = scmp.eq.s32.totalorder %s14, 0
    %p223 = por %p221, %p222
    %p224 = scmp.ne.s32.totalorder %s213, %s216
    %p225 = scmp.eq.s32.totalorder %s19, 1
    %p226 = por %p224, %p225
    %p227 = scmp.ne.s32.totalorder %s216, %s217
    %p228 = scmp.eq.s32.totalorder %s19, 0
    %p229 = por %p227, %p228
    %p230 = scmp.ne.s32.totalorder %s216, %s217
    %p231 = scmp.eq.s32.totalorder %s20, 1
    %p232 = por %p230, %p231
    %p234 = scmp.ne.s32.totalorder %s217, %s233
    %p235 = scmp.eq.s32.totalorder %s20, 0
    %p236 = por %p234, %p235
    %p237 = scmp.le.s32.totalorder 1, %s14
    %p238 = scmp.lt.s32.totalorder %s14, 3
    %p239 = pnand %p237, %p238
    %p240 = pneg %p239
    // Predicated region
    $region9: #{lstm_model_forward.1} parent=5 // pred_check
      _
    $region10: #{lstm_model_forward.1} parent=5 // pred_check_branch
      %242 = sbr.rel (%p239) target = $region12
    $region11: #{lstm_model_forward.1} parent=5 // pred_region
      %s243 = ssub.s32 %s14, 1
      // Predicated region
      $region13: #{lstm_model_forward.1} parent=11 // pred_check
        %p244 = pneg %p75
      $region14: #{lstm_model_forward.1} parent=11 // pred_check_branch
        %246 = sbr.rel (%p244) target = $region16
      $region15: #{lstm_model_forward.1} parent=11 // pred_region
        _
      $region16: #{lstm_model_forward.1} parent=11 // pred_fallthru
        _
      // Predicated region
      $region17: #{lstm_model_forward.1} parent=11 // pred_check
        %p247 = pneg %p96
      $region18: #{lstm_model_forward.1} parent=11 // pred_check_branch
        %249 = sbr.rel (%p247) target = $region20
      $region19: #{lstm_model_forward.1} parent=11 // pred_region
        _
      $region20: #{lstm_model_forward.1} parent=11 // pred_fallthru
        _
      // Predicated region
      $region21: #{lstm_model_forward.1} parent=11 // pred_check
        %p250 = pneg %p117
      $region22: #{lstm_model_forward.1} parent=11 // pred_check_branch
        %252 = sbr.rel (%p250) target = $region24
      $region23: #{lstm_model_forward.1} parent=11 // pred_region
        _
      $region24: #{lstm_model_forward.1} parent=11 // pred_fallthru
        _
      // Predicated region
      $region25: #{lstm_model_forward.1} parent=11 // pred_check
        %p253 = pneg %p138
      $region26: #{lstm_model_forward.1} parent=11 // pred_check_branch
        %255 = sbr.rel (%p253) target = $region28
      $region27: #{lstm_model_forward.1} parent=11 // pred_region
        _
      $region28: #{lstm_model_forward.1} parent=11 // pred_fallthru
        _
      // Predicated region
      $region29: #{lstm_model_forward.1} parent=11 // pred_check
        %p256 = pneg %p159
      $region30: #{lstm_model_forward.1} parent=11 // pred_check_branch
        %258 = sbr.rel (%p256) target = $region32
      $region31: #{lstm_model_forward.1} parent=11 // pred_region
        _
      $region32: #{lstm_model_forward.1} parent=11 // pred_fallthru
        _
      // Predicated region
      $region33: #{lstm_model_forward.1} parent=11 // pred_check
        %p259 = pneg %p180
      $region34: #{lstm_model_forward.1} parent=11 // pred_check_branch
        %261 = sbr.rel (%p259) target = $region36
      $region35: #{lstm_model_forward.1} parent=11 // pred_region
        _
      $region36: #{lstm_model_forward.1} parent=11 // pred_fallthru
        _
      // Predicated region
      $region37: #{lstm_model_forward.1} parent=11 // pred_check
        %p262 = pneg %p201
      $region38: #{lstm_model_forward.1} parent=11 // pred_check_branch
        %264 = sbr.rel (%p262) target = $region40
      $region39: #{lstm_model_forward.1} parent=11 // pred_region
        _
      $region40: #{lstm_model_forward.1} parent=11 // pred_fallthru
        _
    $region12: #{lstm_model_forward.1} parent=5 // pred_fallthru
      _
    %p265 = scmp.lt.s32.totalorder %s14, 2
    // Predicated region
    $region41: #{lstm_model_forward.1} parent=5 // pred_check
      %p266 = pneg %p265
    $region42: #{lstm_model_forward.1} parent=5 // pred_check_branch
      %268 = sbr.rel (%p266) target = $region44
    $region43: #{lstm_model_forward.1} parent=5 // pred_region
      // Predicated region
      $region45: #{lstm_model_forward.1} parent=43 // pred_check
        %p269 = pneg %p48
      $region46: #{lstm_model_forward.1} parent=43 // pred_check_branch
        %271 = sbr.rel (%p269) target = $region48
      $region47: #{lstm_model_forward.1} parent=43 // pred_region
        %s272 = smul.u32 4, %s22
        %p273 = scmp.lt.s32.totalorder %s21, 0
        %s274 = scalar_select %p273, %s21, 0
        %p275 = scmp.lt.s32.totalorder %s272, 7
        %s276 = scalar_select %p275, %s272, 7
        %s277 = smul.addr %s274, 8
        %s278 = sadd.s32 %s276, %s277
        %s279 = smul.addr %s278, 8
        %s280 = scalar_lea.vmem %s0, %s279
        %s281 = smul.u32 4, %s22
      $region48: #{lstm_model_forward.1} parent=43 // pred_fallthru
        _
    $region44: #{lstm_model_forward.1} parent=5 // pred_fallthru
      _
    %p282 = scmp.le.s32.totalorder 1, %s14
    %p283 = scmp.lt.s32.totalorder %s14, 3
    %p284 = pnand %p282, %p283
    %p285 = pneg %p284
    // Predicated region
    $region49: #{lstm_model_forward.1} parent=5 // pred_check
      _
    $region50: #{lstm_model_forward.1} parent=5 // pred_check_branch
      %287 = sbr.rel (%p284) target = $region52
    $region51: #{lstm_model_forward.1} parent=5 // pred_region
      %s288 = ssub.s32 %s14, 1
      %s289 = smul.u32 4, %s24
      %p290 = scmp.lt.s32.totalorder %s23, 0
      %s291 = scalar_select %p290, %s23, 0
      %p292 = scmp.lt.s32.totalorder %s289, 7
      %s293 = scalar_select %p292, %s289, 7
      %s294 = smul.addr %s291, 8
      %s295 = sadd.s32 %s293, %s294
      %s296 = smul.addr %s295, 8
      %s297 = scalar_lea.vmem %s0, %s296
      %p298 = pneg %p54
      %p299 = pneg %p51
      %p300 = pneg %p75
      %p301 = pneg %p72
      %p302 = pneg %p96
      %p303 = pneg %p93
      %p304 = pneg %p117
      %p305 = pneg %p114
      %p306 = pneg %p138
      %p307 = pneg %p135
      %p308 = pneg %p159
      %p309 = pneg %p156
      %p310 = pneg %p180
      %p311 = pneg %p177
      %p312 = pneg %p201
      %p313 = pneg %p198
      %p314 = pneg %p229
      %p315 = pneg %p226
      %s316 = smul.u32 4, %s24
      %p317 = scmp.lt.s32.totalorder %s23, 0
      %s318 = scalar_select %p317, %s23, 0
      %p319 = scmp.lt.s32.totalorder %s316, 7
      %s320 = scalar_select %p319, %s316, 7
      %s321 = smul.addr %s318, 8
      %s322 = sadd.s32 %s320, %s321
      %s323 = smul.addr %s322, 8
      %s324 = scalar_lea.vmem %s8, %s323
      %s325 = smul.u32 4, %s24
      %p326 = scmp.lt.s32.totalorder %s23, 0
      %s327 = scalar_select %p326, %s23, 0
      %p328 = scmp.lt.s32.totalorder %s325, 7
      %s329 = scalar_select %p328, %s325, 7
      %s330 = smul.addr %s327, 8
      %s331 = sadd.s32 %s329, %s330
      %s332 = smul.addr %s331, 8
      %s333 = scalar_lea.vmem %s0, %s332
      %s334 = smul.u32 4, %s24
      %s335 = smul.u32 4, %s24
      %p336 = scmp.lt.s32.totalorder %s23, 0
      %s337 = scalar_select %p336, %s23, 0
      %p338 = scmp.lt.s32.totalorder %s335, 7
      %s339 = scalar_select %p338, %s335, 7
      %s340 = smul.addr %s337, 8
      %s341 = sadd.s32 %s339, %s340
      %s342 = smul.addr %s341, 8
      %s343 = scalar_lea.vmem %s8, %s342
      %s344 = smul.u32 4, %s24
      %p345 = scmp.eq.s32.totalorder %s24, 0
      // Predicated region
      $region53: #{lstm_model_forward.1} parent=51 // pred_check
        %p346 = pneg %p345
      $region54: #{lstm_model_forward.1} parent=51 // pred_check_branch
        %348 = sbr.rel (%p346) target = $region56
      $region55: #{lstm_model_forward.1} parent=51 // pred_region
        %vm349 = vcmask 261120
        %350 = vst.msk [vmem:[#allocation4] sm:$0xff] %vm349, 0.0
        %351 = vst.msk [vmem:[#allocation4 + $0x8] sm:$0xff] %vm349, 0.0
        %352 = vst.msk [vmem:[#allocation5] sm:$0xff] %vm349, 0.0
        %353 = vst.msk [vmem:[#allocation5 + $0x8] sm:$0xff] %vm349, 0.0
      $region56: #{lstm_model_forward.1} parent=51 // pred_fallthru
        _
      %v354 = vld [vmem:[%s333] sm:$0xff]
      %v355 = vld [vmem:[%s333 + $0x8] sm:$0xff]
      %v356 = vld [vmem:[%s333 + $0x10] sm:$0xff]
      %v357 = vld [vmem:[%s333 + $0x18] sm:$0xff]
      %v358 = vld [vmem:[%s1] sm:$0xff]
      %v359 = vld [vmem:[%s1 + $0x8] sm:$0xff]
      %v360 = vld [vmem:[%s3] sm:$0x1]
      %v362 = vlaneseq
      %v363 = vshrl.u32 %v362, 7
      %v364 = vsub.s32 0, %v363
      %v365 = vrot.slane %v360, %v364
      %vm367 = vcmask 130048
      %v369 = vsel %vm367, %v354, 0
      %v372 = vsel %vm367, %v355, 0
      %v375 = vsel %vm367, %v356, 0
      %v378 = vsel %vm367, %v357, 0
      %380 = vmatprep.subr.mxu0 0.0
      %381 = vmatpush1.msra.mxu0 %v358
      %382 = vmatprep.subr.mxu0 0.0
      %383 = vmatpush1.msra.mxu0 %v359
      %384 = vmatprep.subr.mxu0 0.0
      %385 = vmatpush1.msra.mxu0 0.0
      %386 = vmatprep.subr.mxu0 0.0
      %387 = vmatpush1.msra.mxu0 0.0
      %388 = vmatprep.subr.mxu0 0.0
      %389 = vmatpush1.msra.mxu0 0.0
      %390 = vmatprep.subr.mxu0 0.0
      %391 = vmatpush1.msra.mxu0 0.0
      %392 = vmatprep.subr.mxu0 0.0
      %393 = vmatpush1.msra.mxu0 0.0
      %394 = vmatprep.subr.mxu0 0.0
      %395 = vmatpush1.msra.mxu0 0.0
      %396 = vmatprep.subr.mxu0 0.0
      %397 = vmatpush1.msra.mxu0 0.0
      %398 = vmatprep.subr.mxu0 0.0
      %399 = vmatpush1.msra.mxu0 0.0
      %400 = vmatprep.subr.mxu0 0.0
      %401 = vmatpush1.msra.mxu0 0.0
      %402 = vmatprep.subr.mxu0 0.0
      %403 = vmatpush1.msra.mxu0 0.0
      %404 = vmatprep.subr.mxu0 0.0
      %405 = vmatpush1.msra.mxu0 0.0
      %406 = vmatprep.subr.mxu0 0.0
      %407 = vmatpush1.msra.mxu0 0.0
      %408 = vmatprep.subr.mxu0 0.0
      %409 = vmatpush1.msra.mxu0 0.0
      %410 = vmatprep.subr.mxu0 0.0
      %411 = vmatpush1.msra.mxu0 0.0
      %412 = vmatprep.subr.mxu0 0.0
      %413 = vmatpush1.msra.mxu0 0.0
      %414 = vmatprep.subr.mxu0 0.0
      %415 = vmatpush1.msra.mxu0 0.0
      %416 = vmatprep.subr.mxu0 0.0
      %417 = vmatpush1.msra.mxu0 0.0
      %418 = vmatprep.subr.mxu0 0.0
      %419 = vmatpush1.msra.mxu0 0.0
      %420 = vmatprep.subr.mxu0 0.0
      %421 = vmatpush1.msra.mxu0 0.0
      %422 = vmatprep.subr.mxu0 0.0
      %423 = vmatpush1.msra.mxu0 0.0
      %424 = vmatprep.subr.mxu0 0.0
      %425 = vmatpush1.msra.mxu0 0.0
      %426 = vmatprep.subr.mxu0 0.0
      %427 = vmatpush1.msra.mxu0 0.0
      %428 = vmatprep.subr.mxu0 0.0
      %429 = vmatpush1.msra.mxu0 0.0
      %430 = vmatprep.subr.mxu0 0.0
      %431 = vmatpush1.msra.mxu0 0.0
      %432 = vmatprep.subr.mxu0 0.0
      %433 = vmatpush1.msra.mxu0 0.0
      %434 = vmatprep.subr.mxu0 0.0
      %435 = vmatpush1.msra.mxu0 0.0
      %436 = vmatprep.subr.mxu0 0.0
      %437 = vmatpush1.msra.mxu0 0.0
      %438 = vmatprep.subr.mxu0 0.0
      %439 = vmatpush1.msra.mxu0 0.0
      %440 = vmatprep.subr.mxu0 0.0
      %441 = vmatpush1.msra.mxu0 0.0
      %442 = vmatprep.subr.mxu0 0.0
      %443 = vmatpush1.msra.mxu0 0.0
      %444 = vmatprep.mubr.f32.mxu0 0.0
      %445 = vmatmul.mubr.f32.gmra.mrb[0].mxu0 %v369
      %v446 = vpop.f32.mrb[0].mxu0
      %v447 = vadd.f32 %v365, %v446
      %v448 = vpop.f32.mrb[0].mxu0
      %449 = vmatprep.mubr.f32.mxu0 0.0
      %450 = vmatmul.mubr.f32.gmra.mrb[0].mxu0 %v372
      %v451 = vpop.f32.mrb[0].mxu0
      %v452 = vadd.f32 %v365, %v451
      %v453 = vpop.f32.mrb[0].mxu0
      %454 = vmatprep.mubr.f32.mxu0 0.0
      %455 = vmatmul.mubr.f32.gmra.mrb[0].mxu0 %v375
      %v456 = vpop.f32.mrb[0].mxu0
      %v457 = vadd.f32 %v365, %v456
      %v458 = vpop.f32.mrb[0].mxu0
      %459 = vmatprep.mubr.f32.mxu0 0.0
      %460 = vmatmul.mubr.f32.gmra.mrb[0].mxu0 %v378
      %v461 = vpop.f32.mrb[0].mxu0
      %v462 = vadd.f32 %v365, %v461
      %v463 = vpop.f32.mrb[0].mxu0
      %464 = vdwg.mxu0
      %465 = vst [vmem:[#allocation2] sm:$0xff] %v447
      %466 = vst [vmem:[#allocation2 + $0x8] sm:$0xff] %v452
      %467 = vst [vmem:[#allocation2 + $0x10] sm:$0xff] %v457
      %468 = vst [vmem:[#allocation2 + $0x18] sm:$0xff] %v462
      %v469 = vld [vmem:[%s2] sm:$0xff]
      %v470 = vld [vmem:[%s2 + $0x8] sm:$0xff]
      %v471 = vld [vmem:[%s2 + $0x10] sm:$0xff]
      %v472 = vld [vmem:[%s2 + $0x18] sm:$0xff]
      %v473 = vld [vmem:[%s4] sm:$0xff]
      %v474 = vld [vmem:[%s4 + $0x8] sm:$0xff]
      %v475 = vld [vmem:[%s4 + $0x10] sm:$0xff]
      %v476 = vld [vmem:[%s4 + $0x18] sm:$0xff]
      %v477 = vld [vmem:[%s4 + $0x20] sm:$0xff]
      %v478 = vld [vmem:[%s4 + $0x28] sm:$0xff]
      %v479 = vld [vmem:[%s4 + $0x30] sm:$0xff]
      %v480 = vld [vmem:[%s4 + $0x38] sm:$0xff]
      %v481 = vld [vmem:[%s5] sm:$0x1]
      %v482 = vld [vmem:[#allocation4] sm:$0xff]
      %v483 = vld [vmem:[#allocation2] sm:$0xff]
      %vm484 = vcmask 261120
      %v486 = vsel %vm484, %v482, 0
      %488 = vmatprep.subr.mxu0 0.0
      %489 = vmatpush1.msra.mxu0 %v469
      %490 = vmatprep.subr.mxu0 0.0
      %491 = vmatpush1.msra.mxu0 %v470
      %492 = vmatprep.subr.mxu0 0.0
      %493 = vmatpush1.msra.mxu0 %v471
      %494 = vmatprep.subr.mxu0 0.0
      %495 = vmatpush1.msra.mxu0 %v472
      %496 = vmatprep.subr.mxu0 0.0
      %497 = vmatpush1.msra.mxu0 0.0
      %498 = vmatprep.subr.mxu0 0.0
      %499 = vmatpush1.msra.mxu0 0.0
      %500 = vmatprep.subr.mxu0 0.0
      %501 = vmatpush1.msra.mxu0 0.0
      %502 = vmatprep.subr.mxu0 0.0
      %503 = vmatpush1.msra.mxu0 0.0
      %504 = vmatprep.subr.mxu0 0.0
      %505 = vmatpush1.msra.mxu0 0.0
      %506 = vmatprep.subr.mxu0 0.0
      %507 = vmatpush1.msra.mxu0 0.0
      %508 = vmatprep.subr.mxu0 0.0
      %509 = vmatpush1.msra.mxu0 0.0
      %510 = vmatprep.subr.mxu0 0.0
      %511 = vmatpush1.msra.mxu0 0.0
      %512 = vmatprep.subr.mxu0 0.0
      %513 = vmatpush1.msra.mxu0 0.0
      %514 = vmatprep.subr.mxu0 0.0
      %515 = vmatpush1.msra.mxu0 0.0
      %516 = vmatprep.subr.mxu0 0.0
      %517 = vmatpush1.msra.mxu0 0.0
      %518 = vmatprep.subr.mxu0 0.0
      %519 = vmatpush1.msra.mxu0 0.0
      %520 = vmatprep.subr.mxu0 0.0
      %521 = vmatpush1.msra.mxu0 0.0
      %522 = vmatprep.subr.mxu0 0.0
      %523 = vmatpush1.msra.mxu0 0.0
      %524 = vmatprep.subr.mxu0 0.0
      %525 = vmatpush1.msra.mxu0 0.0
      %526 = vmatprep.subr.mxu0 0.0
      %527 = vmatpush1.msra.mxu0 0.0
      %528 = vmatprep.subr.mxu0 0.0
      %529 = vmatpush1.msra.mxu0 0.0
      %530 = vmatprep.subr.mxu0 0.0
      %531 = vmatpush1.msra.mxu0 0.0
      %532 = vmatprep.subr.mxu0 0.0
      %533 = vmatpush1.msra.mxu0 0.0
      %534 = vmatprep.subr.mxu0 0.0
      %535 = vmatpush1.msra.mxu0 0.0
      %536 = vmatprep.subr.mxu0 0.0
      %537 = vmatpush1.msra.mxu0 0.0
      %538 = vmatprep.subr.mxu0 0.0
      %539 = vmatpush1.msra.mxu0 0.0
      %540 = vmatprep.subr.mxu0 0.0
      %541 = vmatpush1.msra.mxu0 0.0
      %542 = vmatprep.subr.mxu0 0.0
      %543 = vmatpush1.msra.mxu0 0.0
      %544 = vmatprep.subr.mxu0 0.0
      %545 = vmatpush1.msra.mxu0 0.0
      %546 = vmatprep.subr.mxu0 0.0
      %547 = vmatpush1.msra.mxu0 0.0
      %548 = vmatprep.subr.mxu0 0.0
      %549 = vmatpush1.msra.mxu0 0.0
      %550 = vmatprep.subr.mxu0 0.0
      %551 = vmatpush1.msra.mxu0 0.0
      %552 = vmatprep.mubr.f32.mxu0 0.0
      %553 = vmatmul.mubr.f32.gmra.mrb[0].mxu0 %v486
      %v554 = vpop.f32.mrb[0].mxu0
      %v555 = vadd.f32 0.0, %v554
      %v556 = vpop.f32.mrb[0].mxu0
      %557 = vdwg.mxu0
      %v558 = vadd.f32 %v483, %v555
      %v559 = vxor.u32 %v558, 2147483648
      %v560 = vmul.f32 %v559, 1.442695
      %v561 = vpow.pop %v560
      %v562 = vadd.f32 %v561, 1.0
      %v563 = vrcp.pop %v562
      %v564 = vmul.f32 1.0, %v563
      %v565 = vtanh.pop %v558
      %v566 = vld [vmem:[#allocation5] sm:$0xff]
      %568 = vrot.lane.b32.xlu0 %v566, 32
      %v569 = vpop.permute.xlu0 %568
      %v571 = vmul.f32 %v564, %v569
      %573 = vrot.lane.b32.xlu0 %v565, 64
      %v574 = vpop.permute.xlu0 %573
      %v576 = vmul.f32 %v564, %v574
      %578 = vrot.lane.b32.xlu0 %v576, 32
      %v579 = vpop.permute.xlu0 %578
      %v581 = vadd.f32 %v571, %v579
      %v582 = vtanh.pop %v581
      %584 = vrot.lane.b32.xlu0 %v582, 64
      %v585 = vpop.permute.xlu0 %584
      %v587 = vmul.f32 %v564, %v585
      %589 = vrot.lane.b32.xlu0 %v581, 96
      %v590 = vpop.permute.xlu0 %589
      %592 = vst.msk [vmem:[#allocation5] sm:$0xff] %vm484, %v590
      %594 = vrot.lane.b32.xlu0 %v587, 32
      %v595 = vpop.permute.xlu0 %594
      %597 = vst.msk [vmem:[#allocation4] sm:$0xff] %vm484, %v595
      %v598 = vld [vmem:[#allocation4] sm:$0xff]
      %s599 = scalar_lea.vmem [#allocation4], 8
      %v600 = vld [vmem:[%s599] sm:$0xff]
      %s601 = scalar_lea.vmem [#allocation2], 8
      %v602 = vld [vmem:[%s601] sm:$0xff]
      %v604 = vsel %vm484, %v598, 0
      %606 = vmatprep.subr.mxu0 0.0
      %607 = vmatpush1.msra.mxu0 %v469
      %608 = vmatprep.subr.mxu0 0.0
      %609 = vmatpush1.msra.mxu0 %v470
      %610 = vmatprep.subr.mxu0 0.0
      %611 = vmatpush1.msra.mxu0 %v471
      %612 = vmatprep.subr.mxu0 0.0
      %613 = vmatpush1.msra.mxu0 %v472
      %614 = vmatprep.subr.mxu0 0.0
      %615 = vmatpush1.msra.mxu0 0.0
      %616 = vmatprep.subr.mxu0 0.0
      %617 = vmatpush1.msra.mxu0 0.0
      %618 = vmatprep.subr.mxu0 0.0
      %619 = vmatpush1.msra.mxu0 0.0
      %620 = vmatprep.subr.mxu0 0.0
      %621 = vmatpush1.msra.mxu0 0.0
      %622 = vmatprep.subr.mxu0 0.0
      %623 = vmatpush1.msra.mxu0 0.0
      %624 = vmatprep.subr.mxu0 0.0
      %625 = vmatpush1.msra.mxu0 0.0
      %626 = vmatprep.subr.mxu0 0.0
      %627 = vmatpush1.msra.mxu0 0.0
      %628 = vmatprep.subr.mxu0 0.0
      %629 = vmatpush1.msra.mxu0 0.0
      %630 = vmatprep.subr.mxu0 0.0
      %631 = vmatpush1.msra.mxu0 0.0
      %632 = vmatprep.subr.mxu0 0.0
      %633 = vmatpush1.msra.mxu0 0.0
      %634 = vmatprep.subr.mxu0 0.0
      %635 = vmatpush1.msra.mxu0 0.0
      %636 = vmatprep.subr.mxu0 0.0
      %637 = vmatpush1.msra.mxu0 0.0
      %638 = vmatprep.subr.mxu0 0.0
      %639 = vmatpush1.msra.mxu0 0.0
      %640 = vmatprep.subr.mxu0 0.0
      %641 = vmatpush1.msra.mxu0 0.0
      %642 = vmatprep.subr.mxu0 0.0
      %643 = vmatpush1.msra.mxu0 0.0
      %644 = vmatprep.subr.mxu0 0.0
      %645 = vmatpush1.msra.mxu0 0.0
      %646 = vmatprep.subr.mxu0 0.0
      %647 = vmatpush1.msra.mxu0 0.0
      %648 = vmatprep.subr.mxu0 0.0
      %649 = vmatpush1.msra.mxu0 0.0
      %650 = vmatprep.subr.mxu0 0.0
      %651 = vmatpush1.msra.mxu0 0.0
      %652 = vmatprep.subr.mxu0 0.0
      %653 = vmatpush1.msra.mxu0 0.0
      %654 = vmatprep.subr.mxu0 0.0
      %655 = vmatpush1.msra.mxu0 0.0
      %656 = vmatprep.subr.mxu0 0.0
      %657 = vmatpush1.msra.mxu0 0.0
      %658 = vmatprep.subr.mxu0 0.0
      %659 = vmatpush1.msra.mxu0 0.0
      %660 = vmatprep.subr.mxu0 0.0
      %661 = vmatpush1.msra.mxu0 0.0
      %662 = vmatprep.subr.mxu0 0.0
      %663 = vmatpush1.msra.mxu0 0.0
      %664 = vmatprep.subr.mxu0 0.0
      %665 = vmatpush1.msra.mxu0 0.0
      %666 = vmatprep.subr.mxu0 0.0
      %667 = vmatpush1.msra.mxu0 0.0
      %668 = vmatprep.subr.mxu0 0.0
      %669 = vmatpush1.msra.mxu0 0.0
      %670 = vmatprep.mubr.f32.mxu0 0.0
      %671 = vmatmul.mubr.f32.gmra.mrb[0].mxu0 %v604
      %v672 = vpop.f32.mrb[0].mxu0
      %v673 = vadd.f32 0.0, %v672
      %v674 = vpop.f32.mrb[0].mxu0
      %675 = vdwg.mxu0
      %v676 = vadd.f32 %v602, %v673
      %v677 = vxor.u32 %v676, 2147483648
      %v678 = vmul.f32 %v677, 1.442695
      %v679 = vpow.pop %v678
      %v680 = vadd.f32 %v679, 1.0
      %v681 = vrcp.pop %v680
      %v682 = vmul.f32 1.0, %v681
      %v683 = vtanh.pop %v676
      %v684 = vld [vmem:[#allocation5] sm:$0xff]
      %686 = vrot.lane.b32.xlu0 %v684, 32
      %v687 = vpop.permute.xlu0 %686
      %v689 = vmul.f32 %v682, %v687
      %691 = vrot.lane.b32.xlu0 %v683, 64
      %v692 = vpop.permute.xlu0 %691
      %v694 = vmul.f32 %v682, %v692
      %696 = vrot.lane.b32.xlu0 %v694, 32
      %v697 = vpop.permute.xlu0 %696
      %v699 = vadd.f32 %v689, %v697
      %v700 = vtanh.pop %v699
      %702 = vrot.lane.b32.xlu0 %v700, 64
      %v703 = vpop.permute.xlu0 %702
      %v705 = vmul.f32 %v682, %v703
      %707 = vrot.lane.b32.xlu0 %v699, 96
      %v708 = vpop.permute.xlu0 %707
      %710 = vst.msk [vmem:[#allocation5] sm:$0xff] %vm484, %v708
      %712 = vrot.lane.b32.xlu0 %v705, 32
      %v713 = vpop.permute.xlu0 %712
      %715 = vst.msk [vmem:[#allocation4] sm:$0xff] %vm484, %v713
      %717 = vrot.lane.b32.xlu0 %v600, 32
      %v718 = vpop.permute.xlu0 %717
      %v720 = vsel %vm484, %v598, %v718
      %v722 = vlaneseq
      %v723 = vshrl.u32 %v722, 7
      %v724 = vsub.s32 0, %v723
      %v725 = vrot.slane %v481, %v724
      %vm727 = vcmask 523264
      %v729 = vsel %vm727, %v720, 0
      %731 = vmatprep.subr.mxu0 0.0
      %732 = vmatpush1.msra.mxu0 %v473
      %733 = vmatprep.subr.mxu0 0.0
      %734 = vmatpush1.msra.mxu0 %v474
      %735 = vmatprep.subr.mxu0 0.0
      %736 = vmatpush1.msra.mxu0 %v475
      %737 = vmatprep.subr.mxu0 0.0
      %738 = vmatpush1.msra.mxu0 %v476
      %739 = vmatprep.subr.mxu0 0.0
      %740 = vmatpush1.msra.mxu0 %v477
      %741 = vmatprep.subr.mxu0 0.0
      %742 = vmatpush1.msra.mxu0 %v478
      %743 = vmatprep.subr.mxu0 0.0
      %744 = vmatpush1.msra.mxu0 %v479
      %745 = vmatprep.subr.mxu0 0.0
      %746 = vmatpush1.msra.mxu0 %v480
      %747 = vmatprep.subr.mxu0 0.0
      %748 = vmatpush1.msra.mxu0 0.0
      %749 = vmatprep.subr.mxu0 0.0
      %750 = vmatpush1.msra.mxu0 0.0
      %751 = vmatprep.subr.mxu0 0.0
      %752 = vmatpush1.msra.mxu0 0.0
      %753 = vmatprep.subr.mxu0 0.0
      %754 = vmatpush1.msra.mxu0 0.0
      %755 = vmatprep.subr.mxu0 0.0
      %756 = vmatpush1.msra.mxu0 0.0
      %757 = vmatprep.subr.mxu0 0.0
      %758 = vmatpush1.msra.mxu0 0.0
      %759 = vmatprep.subr.mxu0 0.0
      %760 = vmatpush1.msra.mxu0 0.0
      %761 = vmatprep.subr.mxu0 0.0
      %762 = vmatpush1.msra.mxu0 0.0
      %763 = vmatprep.subr.mxu0 0.0
      %764 = vmatpush1.msra.mxu0 0.0
      %765 = vmatprep.subr.mxu0 0.0
      %766 = vmatpush1.msra.mxu0 0.0
      %767 = vmatprep.subr.mxu0 0.0
      %768 = vmatpush1.msra.mxu0 0.0
      %769 = vmatprep.subr.mxu0 0.0
      %770 = vmatpush1.msra.mxu0 0.0
      %771 = vmatprep.subr.mxu0 0.0
      %772 = vmatpush1.msra.mxu0 0.0
      %773 = vmatprep.subr.mxu0 0.0
      %774 = vmatpush1.msra.mxu0 0.0
      %775 = vmatprep.subr.mxu0 0.0
      %776 = vmatpush1.msra.mxu0 0.0
      %777 = vmatprep.subr.mxu0 0.0
      %778 = vmatpush1.msra.mxu0 0.0
      %779 = vmatprep.subr.mxu0 0.0
      %780 = vmatpush1.msra.mxu0 0.0
      %781 = vmatprep.subr.mxu0 0.0
      %782 = vmatpush1.msra.mxu0 0.0
      %783 = vmatprep.subr.mxu0 0.0
      %784 = vmatpush1.msra.mxu0 0.0
      %785 = vmatprep.subr.mxu0 0.0
      %786 = vmatpush1.msra.mxu0 0.0
      %787 = vmatprep.subr.mxu0 0.0
      %788 = vmatpush1.msra.mxu0 0.0
      %789 = vmatprep.subr.mxu0 0.0
      %790 = vmatpush1.msra.mxu0 0.0
      %791 = vmatprep.subr.mxu0 0.0
      %792 = vmatpush1.msra.mxu0 0.0
      %793 = vmatprep.subr.mxu0 0.0
      %794 = vmatpush1.msra.mxu0 0.0
      %795 = vmatprep.mubr.f32.mxu0 0.0
      %796 = vmatmul.mubr.f32.gmra.mrb[0].mxu0 %v729
      %v797 = vpop.f32.mrb[0].mxu0
      %v798 = vadd.f32 %v725, %v797
      %v799 = vpop.f32.mrb[0].mxu0
      %800 = vdwg.mxu0
      %v801 = vxor.u32 %v798, 2147483648
      %v802 = vmul.f32 %v801, 1.442695
      %v803 = vpow.pop %v802
      %v804 = vadd.f32 %v803, 1.0
      %v805 = vrcp.pop %v804
      %v806 = vmul.f32 1.0, %v805
      %v807 = vtanh.pop %v798
      %s808 = scalar_lea.vmem [#allocation5], 8
      %v809 = vld [vmem:[%s808] sm:$0xff]
      %811 = vrot.lane.b32.xlu0 %v809, 32
      %v812 = vpop.permute.xlu0 %811
      %v814 = vmul.f32 %v806, %v812
      %816 = vrot.lane.b32.xlu0 %v807, 64
      %v817 = vpop.permute.xlu0 %816
      %v819 = vmul.f32 %v806, %v817
      %821 = vrot.lane.b32.xlu0 %v819, 32
      %v822 = vpop.permute.xlu0 %821
      %v824 = vadd.f32 %v814, %v822
      %v825 = vtanh.pop %v824
      %827 = vrot.lane.b32.xlu0 %v825, 64
      %v828 = vpop.permute.xlu0 %827
      %v830 = vmul.f32 %v806, %v828
      %832 = vrot.lane.b32.xlu0 %v824, 96
      %v833 = vpop.permute.xlu0 %832
      %835 = vst.msk [vmem:[%s808] sm:$0xff] %vm484, %v833
      %837 = vrot.lane.b32.xlu0 %v830, 32
      %v838 = vpop.permute.xlu0 %837
      %840 = vst.msk [vmem:[%s599] sm:$0xff] %vm484, %v838
      %841 = vst.msk [vmem:[#allocation3] sm:$0xff] %vm484, %v838
      %v842 = vld [vmem:[#allocation4] sm:$0xff]
      %v843 = vld [vmem:[%s599] sm:$0xff]
      %s844 = scalar_lea.vmem [#allocation2], 16
      %v845 = vld [vmem:[%s844] sm:$0xff]
      %v847 = vsel %vm484, %v842, 0
      %849 = vmatprep.subr.mxu0 0.0
      %850 = vmatpush1.msra.mxu0 %v469
      %851 = vmatprep.subr.mxu0 0.0
      %852 = vmatpush1.msra.mxu0 %v470
      %853 = vmatprep.subr.mxu0 0.0
      %854 = vmatpush1.msra.mxu0 %v471
      %855 = vmatprep.subr.mxu0 0.0
      %856 = vmatpush1.msra.mxu0 %v472
      %857 = vmatprep.subr.mxu0 0.0
      %858 = vmatpush1.msra.mxu0 0.0
      %859 = vmatprep.subr.mxu0 0.0
      %860 = vmatpush1.msra.mxu0 0.0
      %861 = vmatprep.subr.mxu0 0.0
      %862 = vmatpush1.msra.mxu0 0.0
      %863 = vmatprep.subr.mxu0 0.0
      %864 = vmatpush1.msra.mxu0 0.0
      %865 = vmatprep.subr.mxu0 0.0
      %866 = vmatpush1.msra.mxu0 0.0
      %867 = vmatprep.subr.mxu0 0.0
      %868 = vmatpush1.msra.mxu0 0.0
      %869 = vmatprep.subr.mxu0 0.0
      %870 = vmatpush1.msra.mxu0 0.0
      %871 = vmatprep.subr.mxu0 0.0
      %872 = vmatpush1.msra.mxu0 0.0
      %873 = vmatprep.subr.mxu0 0.0
      %874 = vmatpush1.msra.mxu0 0.0
      %875 = vmatprep.subr.mxu0 0.0
      %876 = vmatpush1.msra.mxu0 0.0
      %877 = vmatprep.subr.mxu0 0.0
      %878 = vmatpush1.msra.mxu0 0.0
      %879 = vmatprep.subr.mxu0 0.0
      %880 = vmatpush1.msra.mxu0 0.0
      %881 = vmatprep.subr.mxu0 0.0
      %882 = vmatpush1.msra.mxu0 0.0
      %883 = vmatprep.subr.mxu0 0.0
      %884 = vmatpush1.msra.mxu0 0.0
      %885 = vmatprep.subr.mxu0 0.0
      %886 = vmatpush1.msra.mxu0 0.0
      %887 = vmatprep.subr.mxu0 0.0
      %888 = vmatpush1.msra.mxu0 0.0
      %889 = vmatprep.subr.mxu0 0.0
      %890 = vmatpush1.msra.mxu0 0.0
      %891 = vmatprep.subr.mxu0 0.0
      %892 = vmatpush1.msra.mxu0 0.0
      %893 = vmatprep.subr.mxu0 0.0
      %894 = vmatpush1.msra.mxu0 0.0
      %895 = vmatprep.subr.mxu0 0.0
      %896 = vmatpush1.msra.mxu0 0.0
      %897 = vmatprep.subr.mxu0 0.0
      %898 = vmatpush1.msra.mxu0 0.0
      %899 = vmatprep.subr.mxu0 0.0
      %900 = vmatpush1.msra.mxu0 0.0
      %901 = vmatprep.subr.mxu0 0.0
      %902 = vmatpush1.msra.mxu0 0.0
      %903 = vmatprep.subr.mxu0 0.0
      %904 = vmatpush1.msra.mxu0 0.0
      %905 = vmatprep.subr.mxu0 0.0
      %906 = vmatpush1.msra.mxu0 0.0
      %907 = vmatprep.subr.mxu0 0.0
      %908 = vmatpush1.msra.mxu0 0.0
      %909 = vmatprep.subr.mxu0 0.0
      %910 = vmatpush1.msra.mxu0 0.0
      %911 = vmatprep.subr.mxu0 0.0
      %912 = vmatpush1.msra.mxu0 0.0
      %913 = vmatprep.mubr.f32.mxu0 0.0
      %914 = vmatmul.mubr.f32.gmra.mrb[0].mxu0 %v847
      %v915 = vpop.f32.mrb[0].mxu0
      %v916 = vadd.f32 0.0, %v915
      %v917 = vpop.f32.mrb[0].mxu0
      %918 = vdwg.mxu0
      %v919 = vadd.f32 %v845, %v916
      %v920 = vxor.u32 %v919, 2147483648
      %v921 = vmul.f32 %v920, 1.442695
      %v922 = vpow.pop %v921
      %v923 = vadd.f32 %v922, 1.0
      %v924 = vrcp.pop %v923
      %v925 = vmul.f32 1.0, %v924
      %v926 = vtanh.pop %v919
      %v927 = vld [vmem:[#allocation5] sm:$0xff]
      %929 = vrot.lane.b32.xlu0 %v927, 32
      %v930 = vpop.permute.xlu0 %929
      %v932 = vmul.f32 %v925, %v930
      %934 = vrot.lane.b32.xlu0 %v926, 64
      %v935 = vpop.permute.xlu0 %934
      %v937 = vmul.f32 %v925, %v935
      %939 = vrot.lane.b32.xlu0 %v937, 32
      %v940 = vpop.permute.xlu0 %939
      %v942 = vadd.f32 %v932, %v940
      %v943 = vtanh.pop %v942
      %945 = vrot.lane.b32.xlu0 %v943, 64
      %v946 = vpop.permute.xlu0 %945
      %v948 = vmul.f32 %v925, %v946
      %950 = vrot.lane.b32.xlu0 %v942, 96
      %v951 = vpop.permute.xlu0 %950
      %953 = vst.msk [vmem:[#allocation5] sm:$0xff] %vm484, %v951
      %955 = vrot.lane.b32.xlu0 %v948, 32
      %v956 = vpop.permute.xlu0 %955
      %958 = vst.msk [vmem:[#allocation4] sm:$0xff] %vm484, %v956
      %960 = vrot.lane.b32.xlu0 %v843, 32
      %v961 = vpop.permute.xlu0 %960
      %v963 = vsel %vm484, %v842, %v961
      %v965 = vsel %vm727, %v963, 0
      %967 = vmatprep.subr.mxu0 0.0
      %968 = vmatpush1.msra.mxu0 %v473
      %969 = vmatprep.subr.mxu0 0.0
      %970 = vmatpush1.msra.mxu0 %v474
      %971 = vmatprep.subr.mxu0 0.0
      %972 = vmatpush1.msra.mxu0 %v475
      %973 = vmatprep.subr.mxu0 0.0
      %974 = vmatpush1.msra.mxu0 %v476
      %975 = vmatprep.subr.mxu0 0.0
      %976 = vmatpush1.msra.mxu0 %v477
      %977 = vmatprep.subr.mxu0 0.0
      %978 = vmatpush1.msra.mxu0 %v478
      %979 = vmatprep.subr.mxu0 0.0
      %980 = vmatpush1.msra.mxu0 %v479
      %981 = vmatprep.subr.mxu0 0.0
      %982 = vmatpush1.msra.mxu0 %v480
      %983 = vmatprep.subr.mxu0 0.0
      %984 = vmatpush1.msra.mxu0 0.0
      %985 = vmatprep.subr.mxu0 0.0
      %986 = vmatpush1.msra.mxu0 0.0
      %987 = vmatprep.subr.mxu0 0.0
      %988 = vmatpush1.msra.mxu0 0.0
      %989 = vmatprep.subr.mxu0 0.0
      %990 = vmatpush1.msra.mxu0 0.0
      %991 = vmatprep.subr.mxu0 0.0
      %992 = vmatpush1.msra.mxu0 0.0
      %993 = vmatprep.subr.mxu0 0.0
      %994 = vmatpush1.msra.mxu0 0.0
      %995 = vmatprep.subr.mxu0 0.0
      %996 = vmatpush1.msra.mxu0 0.0
      %997 = vmatprep.subr.mxu0 0.0
      %998 = vmatpush1.msra.mxu0 0.0
      %999 = vmatprep.subr.mxu0 0.0
      %1000 = vmatpush1.msra.mxu0 0.0
      %1001 = vmatprep.subr.mxu0 0.0
      %1002 = vmatpush1.msra.mxu0 0.0
      %1003 = vmatprep.subr.mxu0 0.0
      %1004 = vmatpush1.msra.mxu0 0.0
      %1005 = vmatprep.subr.mxu0 0.0
      %1006 = vmatpush1.msra.mxu0 0.0
      %1007 = vmatprep.subr.mxu0 0.0
      %1008 = vmatpush1.msra.mxu0 0.0
      %1009 = vmatprep.subr.mxu0 0.0
      %1010 = vmatpush1.msra.mxu0 0.0
      %1011 = vmatprep.subr.mxu0 0.0
      %1012 = vmatpush1.msra.mxu0 0.0
      %1013 = vmatprep.subr.mxu0 0.0
      %1014 = vmatpush1.msra.mxu0 0.0
      %1015 = vmatprep.subr.mxu0 0.0
      %1016 = vmatpush1.msra.mxu0 0.0
      %1017 = vmatprep.subr.mxu0 0.0
      %1018 = vmatpush1.msra.mxu0 0.0
      %1019 = vmatprep.subr.mxu0 0.0
      %1020 = vmatpush1.msra.mxu0 0.0
      %1021 = vmatprep.subr.mxu0 0.0
      %1022 = vmatpush1.msra.mxu0 0.0
      %1023 = vmatprep.subr.mxu0 0.0
      %1024 = vmatpush1.msra.mxu0 0.0
      %1025 = vmatprep.subr.mxu0 0.0
      %1026 = vmatpush1.msra.mxu0 0.0
      %1027 = vmatprep.subr.mxu0 0.0
      %1028 = vmatpush1.msra.mxu0 0.0
      %1029 = vmatprep.subr.mxu0 0.0
      %1030 = vmatpush1.msra.mxu0 0.0
      %1031 = vmatprep.mubr.f32.mxu0 0.0
      %1032 = vmatmul.mubr.f32.gmra.mrb[0].mxu0 %v965
      %v1033 = vpop.f32.mrb[0].mxu0
      %v1034 = vadd.f32 %v725, %v1033
      %v1035 = vpop.f32.mrb[0].mxu0
      %1036 = vdwg.mxu0
      %v1037 = vxor.u32 %v1034, 2147483648
      %v1038 = vmul.f32 %v1037, 1.442695
      %v1039 = vpow.pop %v1038
      %v1040 = vadd.f32 %v1039, 1.0
      %v1041 = vrcp.pop %v1040
      %v1042 = vmul.f32 1.0, %v1041
      %v1043 = vtanh.pop %v1034
      %v1044 = vld [vmem:[%s808] sm:$0xff]
      %1046 = vrot.lane.b32.xlu0 %v1044, 32
      %v1047 = vpop.permute.xlu0 %1046
      %v1049 = vmul.f32 %v1042, %v1047
      %1051 = vrot.lane.b32.xlu0 %v1043, 64
      %v1052 = vpop.permute.xlu0 %1051
      %v1054 = vmul.f32 %v1042, %v1052
      %1056 = vrot.lane.b32.xlu0 %v1054, 32
      %v1057 = vpop.permute.xlu0 %1056
      %v1059 = vadd.f32 %v1049, %v1057
      %v1060 = vtanh.pop %v1059
      %1062 = vrot.lane.b32.xlu0 %v1060, 64
      %v1063 = vpop.permute.xlu0 %1062
      %v1065 = vmul.f32 %v1042, %v1063
      %1067 = vrot.lane.b32.xlu0 %v1059, 96
      %v1068 = vpop.permute.xlu0 %1067
      %1070 = vst.msk [vmem:[%s808] sm:$0xff] %vm484, %v1068
      %1072 = vrot.lane.b32.xlu0 %v1065, 32
      %v1073 = vpop.permute.xlu0 %1072
      %1075 = vst.msk [vmem:[%s599] sm:$0xff] %vm484, %v1073
      %s1076 = scalar_lea.vmem [#allocation3], 8
      %1077 = vst.msk [vmem:[%s1076] sm:$0xff] %vm484, %v1073
      %v1078 = vld [vmem:[#allocation4] sm:$0xff]
      %v1079 = vld [vmem:[%s599] sm:$0xff]
      %s1080 = scalar_lea.vmem [#allocation2], 24
      %v1081 = vld [vmem:[%s1080] sm:$0xff]
      %v1083 = vsel %vm484, %v1078, 0
      %1085 = vmatprep.subr.mxu0 0.0
      %1086 = vmatpush1.msra.mxu0 %v469
      %1087 = vmatprep.subr.mxu0 0.0
      %1088 = vmatpush1.msra.mxu0 %v470
      %1089 = vmatprep.subr.mxu0 0.0
      %1090 = vmatpush1.msra.mxu0 %v471
      %1091 = vmatprep.subr.mxu0 0.0
      %1092 = vmatpush1.msra.mxu0 %v472
      %1093 = vmatprep.subr.mxu0 0.0
      %1094 = vmatpush1.msra.mxu0 0.0
      %1095 = vmatprep.subr.mxu0 0.0
      %1096 = vmatpush1.msra.mxu0 0.0
      %1097 = vmatprep.subr.mxu0 0.0
      %1098 = vmatpush1.msra.mxu0 0.0
      %1099 = vmatprep.subr.mxu0 0.0
      %1100 = vmatpush1.msra.mxu0 0.0
      %1101 = vmatprep.subr.mxu0 0.0
      %1102 = vmatpush1.msra.mxu0 0.0
      %1103 = vmatprep.subr.mxu0 0.0
      %1104 = vmatpush1.msra.mxu0 0.0
      %1105 = vmatprep.subr.mxu0 0.0
      %1106 = vmatpush1.msra.mxu0 0.0
      %1107 = vmatprep.subr.mxu0 0.0
      %1108 = vmatpush1.msra.mxu0 0.0
      %1109 = vmatprep.subr.mxu0 0.0
      %1110 = vmatpush1.msra.mxu0 0.0
      %1111 = vmatprep.subr.mxu0 0.0
      %1112 = vmatpush1.msra.mxu0 0.0
      %1113 = vmatprep.subr.mxu0 0.0
      %1114 = vmatpush1.msra.mxu0 0.0
      %1115 = vmatprep.subr.mxu0 0.0
      %1116 = vmatpush1.msra.mxu0 0.0
      %1117 = vmatprep.subr.mxu0 0.0
      %1118 = vmatpush1.msra.mxu0 0.0
      %1119 = vmatprep.subr.mxu0 0.0
      %1120 = vmatpush1.msra.mxu0 0.0
      %1121 = vmatprep.subr.mxu0 0.0
      %1122 = vmatpush1.msra.mxu0 0.0
      %1123 = vmatprep.subr.mxu0 0.0
      %1124 = vmatpush1.msra.mxu0 0.0
      %1125 = vmatprep.subr.mxu0 0.0
      %1126 = vmatpush1.msra.mxu0 0.0
      %1127 = vmatprep.subr.mxu0 0.0
      %1128 = vmatpush1.msra.mxu0 0.0
      %1129 = vmatprep.subr.mxu0 0.0
      %1130 = vmatpush1.msra.mxu0 0.0
      %1131 = vmatprep.subr.mxu0 0.0
      %1132 = vmatpush1.msra.mxu0 0.0
      %1133 = vmatprep.subr.mxu0 0.0
      %1134 = vmatpush1.msra.mxu0 0.0
      %1135 = vmatprep.subr.mxu0 0.0
      %1136 = vmatpush1.msra.mxu0 0.0
      %1137 = vmatprep.subr.mxu0 0.0
      %1138 = vmatpush1.msra.mxu0 0.0
      %1139 = vmatprep.subr.mxu0 0.0
      %1140 = vmatpush1.msra.mxu0 0.0
      %1141 = vmatprep.subr.mxu0 0.0
      %1142 = vmatpush1.msra.mxu0 0.0
      %1143 = vmatprep.subr.mxu0 0.0
      %1144 = vmatpush1.msra.mxu0 0.0
      %1145 = vmatprep.subr.mxu0 0.0
      %1146 = vmatpush1.msra.mxu0 0.0
      %1147 = vmatprep.subr.mxu0 0.0
      %1148 = vmatpush1.msra.mxu0 0.0
      %1149 = vmatprep.mubr.f32.mxu0 0.0
      %1150 = vmatmul.mubr.f32.gmra.mrb[0].mxu0 %v1083
      %v1151 = vpop.f32.mrb[0].mxu0
      %v1152 = vadd.f32 0.0, %v1151
      %v1153 = vpop.f32.mrb[0].mxu0
      %1154 = vdwg.mxu0
      %v1155 = vadd.f32 %v1081, %v1152
      %v1156 = vxor.u32 %v1155, 2147483648
      %v1157 = vmul.f32 %v1156, 1.442695
      %v1158 = vpow.pop %v1157
      %v1159 = vadd.f32 %v1158, 1.0
      %v1160 = vrcp.pop %v1159
      %v1161 = vmul.f32 1.0, %v1160
      %v1162 = vtanh.pop %v1155
      %v1163 = vld [vmem:[#allocation5] sm:$0xff]
      %1165 = vrot.lane.b32.xlu0 %v1163, 32
      %v1166 = vpop.permute.xlu0 %1165
      %v1168 = vmul.f32 %v1161, %v1166
      %1170 = vrot.lane.b32.xlu0 %v1162, 64
      %v1171 = vpop.permute.xlu0 %1170
      %v1173 = vmul.f32 %v1161, %v1171
      %1175 = vrot.lane.b32.xlu0 %v1173, 32
      %v1176 = vpop.permute.xlu0 %1175
      %v1178 = vadd.f32 %v1168, %v1176
      %v1179 = vtanh.pop %v1178
      %1181 = vrot.lane.b32.xlu0 %v1179, 64
      %v1182 = vpop.permute.xlu0 %1181
      %v1184 = vmul.f32 %v1161, %v1182
      %1186 = vrot.lane.b32.xlu0 %v1178, 96
      %v1187 = vpop.permute.xlu0 %1186
      %1189 = vst.msk [vmem:[#allocation5] sm:$0xff] %vm484, %v1187
      %1191 = vrot.lane.b32.xlu0 %v1184, 32
      %v1192 = vpop.permute.xlu0 %1191
      %1194 = vst.msk [vmem:[#allocation4] sm:$0xff] %vm484, %v1192
      %1196 = vrot.lane.b32.xlu0 %v1079, 32
      %v1197 = vpop.permute.xlu0 %1196
      %v1199 = vsel %vm484, %v1078, %v1197
      %v1201 = vsel %vm727, %v1199, 0
      %1203 = vmatprep.subr.mxu0 0.0
      %1204 = vmatpush1.msra.mxu0 %v473
      %1205 = vmatprep.subr.mxu0 0.0
      %1206 = vmatpush1.msra.mxu0 %v474
      %1207 = vmatprep.subr.mxu0 0.0
      %1208 = vmatpush1.msra.mxu0 %v475
      %1209 = vmatprep.subr.mxu0 0.0
      %1210 = vmatpush1.msra.mxu0 %v476
      %1211 = vmatprep.subr.mxu0 0.0
      %1212 = vmatpush1.msra.mxu0 %v477
      %1213 = vmatprep.subr.mxu0 0.0
      %1214 = vmatpush1.msra.mxu0 %v478
      %1215 = vmatprep.subr.mxu0 0.0
      %1216 = vmatpush1.msra.mxu0 %v479
      %1217 = vmatprep.subr.mxu0 0.0
      %1218 = vmatpush1.msra.mxu0 %v480
      %1219 = vmatprep.subr.mxu0 0.0
      %1220 = vmatpush1.msra.mxu0 0.0
      %1221 = vmatprep.subr.mxu0 0.0
      %1222 = vmatpush1.msra.mxu0 0.0
      %1223 = vmatprep.subr.mxu0 0.0
      %1224 = vmatpush1.msra.mxu0 0.0
      %1225 = vmatprep.subr.mxu0 0.0
      %1226 = vmatpush1.msra.mxu0 0.0
      %1227 = vmatprep.subr.mxu0 0.0
      %1228 = vmatpush1.msra.mxu0 0.0
      %1229 = vmatprep.subr.mxu0 0.0
      %1230 = vmatpush1.msra.mxu0 0.0
      %1231 = vmatprep.subr.mxu0 0.0
      %1232 = vmatpush1.msra.mxu0 0.0
      %1233 = vmatprep.subr.mxu0 0.0
      %1234 = vmatpush1.msra.mxu0 0.0
      %1235 = vmatprep.subr.mxu0 0.0
      %1236 = vmatpush1.msra.mxu0 0.0
      %1237 = vmatprep.subr.mxu0 0.0
      %1238 = vmatpush1.msra.mxu0 0.0
      %1239 = vmatprep.subr.mxu0 0.0
      %1240 = vmatpush1.msra.mxu0 0.0
      %1241 = vmatprep.subr.mxu0 0.0
      %1242 = vmatpush1.msra.mxu0 0.0
      %1243 = vmatprep.subr.mxu0 0.0
      %1244 = vmatpush1.msra.mxu0 0.0
      %1245 = vmatprep.subr.mxu0 0.0
      %1246 = vmatpush1.msra.mxu0 0.0
      %1247 = vmatprep.subr.mxu0 0.0
      %1248 = vmatpush1.msra.mxu0 0.0
      %1249 = vmatprep.subr.mxu0 0.0
      %1250 = vmatpush1.msra.mxu0 0.0
      %1251 = vmatprep.subr.mxu0 0.0
      %1252 = vmatpush1.msra.mxu0 0.0
      %1253 = vmatprep.subr.mxu0 0.0
      %1254 = vmatpush1.msra.mxu0 0.0
      %1255 = vmatprep.subr.mxu0 0.0
      %1256 = vmatpush1.msra.mxu0 0.0
      %1257 = vmatprep.subr.mxu0 0.0
      %1258 = vmatpush1.msra.mxu0 0.0
      %1259 = vmatprep.subr.mxu0 0.0
      %1260 = vmatpush1.msra.mxu0 0.0
      %1261 = vmatprep.subr.mxu0 0.0
      %1262 = vmatpush1.msra.mxu0 0.0
      %1263 = vmatprep.subr.mxu0 0.0
      %1264 = vmatpush1.msra.mxu0 0.0
      %1265 = vmatprep.subr.mxu0 0.0
      %1266 = vmatpush1.msra.mxu0 0.0
      %1267 = vmatprep.mubr.f32.mxu0 0.0
      %1268 = vmatmul.mubr.f32.gmra.mrb[0].mxu0 %v1201
      %v1269 = vpop.f32.mrb[0].mxu0
      %v1270 = vadd.f32 %v725, %v1269
      %v1271 = vpop.f32.mrb[0].mxu0
      %1272 = vdwg.mxu0
      %v1273 = vxor.u32 %v1270, 2147483648
      %v1274 = vmul.f32 %v1273, 1.442695
      %v1275 = vpow.pop %v1274
      %v1276 = vadd.f32 %v1275, 1.0
      %v1277 = vrcp.pop %v1276
      %v1278 = vmul.f32 1.0, %v1277
      %v1279 = vtanh.pop %v1270
      %v1280 = vld [vmem:[%s808] sm:$0xff]
      %1282 = vrot.lane.b32.xlu0 %v1280, 32
      %v1283 = vpop.permute.xlu0 %1282
      %v1285 = vmul.f32 %v1278, %v1283
      %1287 = vrot.lane.b32.xlu0 %v1279, 64
      %v1288 = vpop.permute.xlu0 %1287
      %v1290 = vmul.f32 %v1278, %v1288
      %1292 = vrot.lane.b32.xlu0 %v1290, 32
      %v1293 = vpop.permute.xlu0 %1292
      %v1295 = vadd.f32 %v1285, %v1293
      %v1296 = vtanh.pop %v1295
      %1298 = vrot.lane.b32.xlu0 %v1296, 64
      %v1299 = vpop.permute.xlu0 %1298
      %v1301 = vmul.f32 %v1278, %v1299
      %1303 = vrot.lane.b32.xlu0 %v1295, 96
      %v1304 = vpop.permute.xlu0 %1303
      %1306 = vst.msk [vmem:[%s808] sm:$0xff] %vm484, %v1304
      %1308 = vrot.lane.b32.xlu0 %v1301, 32
      %v1309 = vpop.permute.xlu0 %1308
      %1311 = vst.msk [vmem:[%s599] sm:$0xff] %vm484, %v1309
      %s1312 = scalar_lea.vmem [#allocation3], 16
      %1313 = vst.msk [vmem:[%s1312] sm:$0xff] %vm484, %v1309
      %v1314 = vld [vmem:[#allocation4] sm:$0xff]
      %v1315 = vld [vmem:[%s599] sm:$0xff]
      %1317 = vrot.lane.b32.xlu0 %v1315, 32
      %v1318 = vpop.permute.xlu0 %1317
      %v1320 = vsel %vm484, %v1314, %v1318
      %v1322 = vsel %vm727, %v1320, 0
      %1324 = vmatprep.subr.mxu0 0.0
      %1325 = vmatpush1.msra.mxu0 %v473
      %1326 = vmatprep.subr.mxu0 0.0
      %1327 = vmatpush1.msra.mxu0 %v474
      %1328 = vmatprep.subr.mxu0 0.0
      %1329 = vmatpush1.msra.mxu0 %v475
      %1330 = vmatprep.subr.mxu0 0.0
      %1331 = vmatpush1.msra.mxu0 %v476
      %1332 = vmatprep.subr.mxu0 0.0
      %1333 = vmatpush1.msra.mxu0 %v477
      %1334 = vmatprep.subr.mxu0 0.0
      %1335 = vmatpush1.msra.mxu0 %v478
      %1336 = vmatprep.subr.mxu0 0.0
      %1337 = vmatpush1.msra.mxu0 %v479
      %1338 = vmatprep.subr.mxu0 0.0
      %1339 = vmatpush1.msra.mxu0 %v480
      %1340 = vmatprep.subr.mxu0 0.0
      %1341 = vmatpush1.msra.mxu0 0.0
      %1342 = vmatprep.subr.mxu0 0.0
      %1343 = vmatpush1.msra.mxu0 0.0
      %1344 = vmatprep.subr.mxu0 0.0
      %1345 = vmatpush1.msra.mxu0 0.0
      %1346 = vmatprep.subr.mxu0 0.0
      %1347 = vmatpush1.msra.mxu0 0.0
      %1348 = vmatprep.subr.mxu0 0.0
      %1349 = vmatpush1.msra.mxu0 0.0
      %1350 = vmatprep.subr.mxu0 0.0
      %1351 = vmatpush1.msra.mxu0 0.0
      %1352 = vmatprep.subr.mxu0 0.0
      %1353 = vmatpush1.msra.mxu0 0.0
      %1354 = vmatprep.subr.mxu0 0.0
      %1355 = vmatpush1.msra.mxu0 0.0
      %1356 = vmatprep.subr.mxu0 0.0
      %1357 = vmatpush1.msra.mxu0 0.0
      %1358 = vmatprep.subr.mxu0 0.0
      %1359 = vmatpush1.msra.mxu0 0.0
      %1360 = vmatprep.subr.mxu0 0.0
      %1361 = vmatpush1.msra.mxu0 0.0
      %1362 = vmatprep.subr.mxu0 0.0
      %1363 = vmatpush1.msra.mxu0 0.0
      %1364 = vmatprep.subr.mxu0 0.0
      %1365 = vmatpush1.msra.mxu0 0.0
      %1366 = vmatprep.subr.mxu0 0.0
      %1367 = vmatpush1.msra.mxu0 0.0
      %1368 = vmatprep.subr.mxu0 0.0
      %1369 = vmatpush1.msra.mxu0 0.0
      %1370 = vmatprep.subr.mxu0 0.0
      %1371 = vmatpush1.msra.mxu0 0.0
      %1372 = vmatprep.subr.mxu0 0.0
      %1373 = vmatpush1.msra.mxu0 0.0
      %1374 = vmatprep.subr.mxu0 0.0
      %1375 = vmatpush1.msra.mxu0 0.0
      %1376 = vmatprep.subr.mxu0 0.0
      %1377 = vmatpush1.msra.mxu0 0.0
      %1378 = vmatprep.subr.mxu0 0.0
      %1379 = vmatpush1.msra.mxu0 0.0
      %1380 = vmatprep.subr.mxu0 0.0
      %1381 = vmatpush1.msra.mxu0 0.0
      %1382 = vmatprep.subr.mxu0 0.0
      %1383 = vmatpush1.msra.mxu0 0.0
      %1384 = vmatprep.subr.mxu0 0.0
      %1385 = vmatpush1.msra.mxu0 0.0
      %1386 = vmatprep.subr.mxu0 0.0
      %1387 = vmatpush1.msra.mxu0 0.0
      %1388 = vmatprep.mubr.f32.mxu0 0.0
      %1389 = vmatmul.mubr.f32.gmra.mrb[0].mxu0 %v1322
      %v1390 = vpop.f32.mrb[0].mxu0
      %v1391 = vadd.f32 %v725, %v1390
      %v1392 = vpop.f32.mrb[0].mxu0
      %1393 = vdwg.mxu0
      %v1394 = vxor.u32 %v1391, 2147483648
      %v1395 = vmul.f32 %v1394, 1.442695
      %v1396 = vpow.pop %v1395
      %v1397 = vadd.f32 %v1396, 1.0
      %v1398 = vrcp.pop %v1397
      %v1399 = vmul.f32 1.0, %v1398
      %v1400 = vtanh.pop %v1391
      %v1401 = vld [vmem:[%s808] sm:$0xff]
      %1403 = vrot.lane.b32.xlu0 %v1401, 32
      %v1404 = vpop.permute.xlu0 %1403
      %v1406 = vmul.f32 %v1399, %v1404
      %1408 = vrot.lane.b32.xlu0 %v1400, 64
      %v1409 = vpop.permute.xlu0 %1408
      %v1411 = vmul.f32 %v1399, %v1409
      %1413 = vrot.lane.b32.xlu0 %v1411, 32
      %v1414 = vpop.permute.xlu0 %1413
      %v1416 = vadd.f32 %v1406, %v1414
      %v1417 = vtanh.pop %v1416
      %1419 = vrot.lane.b32.xlu0 %v1417, 64
      %v1420 = vpop.permute.xlu0 %1419
      %v1422 = vmul.f32 %v1399, %v1420
      %1424 = vrot.lane.b32.xlu0 %v1416, 96
      %v1425 = vpop.permute.xlu0 %1424
      %1427 = vst.msk [vmem:[%s808] sm:$0xff] %vm484, %v1425
      %1429 = vrot.lane.b32.xlu0 %v1422, 32
      %v1430 = vpop.permute.xlu0 %1429
      %1432 = vst.msk [vmem:[%s599] sm:$0xff] %vm484, %v1430
      %s1433 = scalar_lea.vmem [#allocation3], 24
      %1434 = vst.msk [vmem:[%s1433] sm:$0xff] %vm484, %v1430
      %v1435 = vld [vmem:[#allocation3] sm:$0xff]
      %v1436 = vld [vmem:[#allocation3 + $0x8] sm:$0xff]
      %v1437 = vld [vmem:[#allocation3 + $0x10] sm:$0xff]
      %v1438 = vld [vmem:[#allocation3 + $0x18] sm:$0xff]
      %v1439 = vtanh.pop %v1435
      %v1440 = vtanh.pop %v1436
      %v1441 = vtanh.pop %v1437
      %v1442 = vtanh.pop %v1438
      %v1443 = vld [vmem:[%s6] sm:$0xff]
      %v1444 = vld [vmem:[%s6 + $0x8] sm:$0xff]
      %v1445 = vld [vmem:[%s6 + $0x10] sm:$0xff]
      %v1446 = vld [vmem:[%s6 + $0x18] sm:$0xff]
      %v1447 = vld [vmem:[%s7] sm:$0x1]
      %v1449 = vlaneseq
      %v1450 = vshrl.u32 %v1449, 7
      %v1451 = vsub.s32 0, %v1450
      %v1452 = vrot.slane %v1447, %v1451
      %v1455 = vsel %vm484, %v1439, 0
      %v1458 = vsel %vm484, %v1440, 0
      %v1461 = vsel %vm484, %v1441, 0
      %v1464 = vsel %vm484, %v1442, 0
      %1466 = vmatprep.subr.mxu0 0.0
      %1467 = vmatpush1.msra.mxu0 %v1443
      %1468 = vmatprep.subr.mxu0 0.0
      %1469 = vmatpush1.msra.mxu0 %v1444
      %1470 = vmatprep.subr.mxu0 0.0
      %1471 = vmatpush1.msra.mxu0 %v1445
      %1472 = vmatprep.subr.mxu0 0.0
      %1473 = vmatpush1.msra.mxu0 %v1446
      %1474 = vmatprep.subr.mxu0 0.0
      %1475 = vmatpush1.msra.mxu0 0.0
      %1476 = vmatprep.subr.mxu0 0.0
      %1477 = vmatpush1.msra.mxu0 0.0
      %1478 = vmatprep.subr.mxu0 0.0
      %1479 = vmatpush1.msra.mxu0 0.0
      %1480 = vmatprep.subr.mxu0 0.0
      %1481 = vmatpush1.msra.mxu0 0.0
      %1482 = vmatprep.subr.mxu0 0.0
      %1483 = vmatpush1.msra.mxu0 0.0
      %1484 = vmatprep.subr.mxu0 0.0
      %1485 = vmatpush1.msra.mxu0 0.0
      %1486 = vmatprep.subr.mxu0 0.0
      %1487 = vmatpush1.msra.mxu0 0.0
      %1488 = vmatprep.subr.mxu0 0.0
      %1489 = vmatpush1.msra.mxu0 0.0
      %1490 = vmatprep.subr.mxu0 0.0
      %1491 = vmatpush1.msra.mxu0 0.0
      %1492 = vmatprep.subr.mxu0 0.0
      %1493 = vmatpush1.msra.mxu0 0.0
      %1494 = vmatprep.subr.mxu0 0.0
      %1495 = vmatpush1.msra.mxu0 0.0
      %1496 = vmatprep.subr.mxu0 0.0
      %1497 = vmatpush1.msra.mxu0 0.0
      %1498 = vmatprep.subr.mxu0 0.0
      %1499 = vmatpush1.msra.mxu0 0.0
      %1500 = vmatprep.subr.mxu0 0.0
      %1501 = vmatpush1.msra.mxu0 0.0
      %1502 = vmatprep.subr.mxu0 0.0
      %1503 = vmatpush1.msra.mxu0 0.0
      %1504 = vmatprep.subr.mxu0 0.0
      %1505 = vmatpush1.msra.mxu0 0.0
      %1506 = vmatprep.subr.mxu0 0.0
      %1507 = vmatpush1.msra.mxu0 0.0
      %1508 = vmatprep.subr.mxu0 0.0
      %1509 = vmatpush1.msra.mxu0 0.0
      %1510 = vmatprep.subr.mxu0 0.0
      %1511 = vmatpush1.msra.mxu0 0.0
      %1512 = vmatprep.subr.mxu0 0.0
      %1513 = vmatpush1.msra.mxu0 0.0
      %1514 = vmatprep.subr.mxu0 0.0
      %1515 = vmatpush1.msra.mxu0 0.0
      %1516 = vmatprep.subr.mxu0 0.0
      %1517 = vmatpush1.msra.mxu0 0.0
      %1518 = vmatprep.subr.mxu0 0.0
      %1519 = vmatpush1.msra.mxu0 0.0
      %1520 = vmatprep.subr.mxu0 0.0
      %1521 = vmatpush1.msra.mxu0 0.0
      %1522 = vmatprep.subr.mxu0 0.0
      %1523 = vmatpush1.msra.mxu0 0.0
      %1524 = vmatprep.subr.mxu0 0.0
      %1525 = vmatpush1.msra.mxu0 0.0
      %1526 = vmatprep.subr.mxu0 0.0
      %1527 = vmatpush1.msra.mxu0 0.0
      %1528 = vmatprep.subr.mxu0 0.0
      %1529 = vmatpush1.msra.mxu0 0.0
      %1530 = vmatprep.mubr.f32.mxu0 0.0
      %1531 = vmatmul.mubr.f32.gmra.mrb[0].mxu0 %v1455
      %v1532 = vpop.f32.mrb[0].mxu0
      %v1533 = vadd.f32 %v1452, %v1532
      %v1534 = vpop.f32.mrb[0].mxu0
      %1535 = vmatprep.mubr.f32.mxu0 0.0
      %1536 = vmatmul.mubr.f32.gmra.mrb[0].mxu0 %v1458
      %v1537 = vpop.f32.mrb[0].mxu0
      %v1538 = vadd.f32 %v1452, %v1537
      %v1539 = vpop.f32.mrb[0].mxu0
      %1540 = vmatprep.mubr.f32.mxu0 0.0
      %1541 = vmatmul.mubr.f32.gmra.mrb[0].mxu0 %v1461
      %v1542 = vpop.f32.mrb[0].mxu0
      %v1543 = vadd.f32 %v1452, %v1542
      %v1544 = vpop.f32.mrb[0].mxu0
      %1545 = vmatprep.mubr.f32.mxu0 0.0
      %1546 = vmatmul.mubr.f32.gmra.mrb[0].mxu0 %v1464
      %v1547 = vpop.f32.mrb[0].mxu0
      %v1548 = vadd.f32 %v1452, %v1547
      %v1549 = vpop.f32.mrb[0].mxu0
      %1550 = vdwg.mxu0
      %vm1551 = vcmask 64512
      %1552 = vst.msk [vmem:[%s343] sm:$0xff] %vm1551, %v1533
      %1553 = vst.msk [vmem:[%s343 + $0x8] sm:$0xff] %vm1551, %v1538
      %1554 = vst.msk [vmem:[%s343 + $0x10] sm:$0xff] %vm1551, %v1543
      %1555 = vst.msk [vmem:[%s343 + $0x18] sm:$0xff] %vm1551, %v1548
      %s1556 = smul.u32 4, %s24
      %p1557 = scmp.lt.s32.totalorder %s23, 0
      %s1558 = scalar_select %p1557, %s23, 0
      %p1559 = scmp.lt.s32.totalorder %s1556, 7
      %s1560 = scalar_select %p1559, %s1556, 7
      %s1561 = smul.addr %s1558, 8
      %s1562 = sadd.s32 %s1560, %s1561
      %s1563 = smul.addr %s1562, 8
      %s1564 = scalar_lea.vmem %s8, %s1563
      // Predicated region
      $region57: #{lstm_model_forward.1} parent=51 // pred_check
        %p1565 = pneg %p226
      $region58: #{lstm_model_forward.1} parent=51 // pred_check_branch
        %1567 = sbr.rel (%p1565) target = $region60
      $region59: #{lstm_model_forward.1} parent=51 // pred_region
        %s1568 = smul.u32 4, %s24
      $region60: #{lstm_model_forward.1} parent=51 // pred_fallthru
        _
    $region52: #{lstm_model_forward.1} parent=5 // pred_fallthru
      _
    %p1569 = scmp.le.s32.totalorder 2, %s14
    // Predicated region
    $region61: #{lstm_model_forward.1} parent=5 // pred_check
      %p1570 = pneg %p1569
    $region62: #{lstm_model_forward.1} parent=5 // pred_check_branch
      %1572 = sbr.rel (%p1570) target = $region64
    $region63: #{lstm_model_forward.1} parent=5 // pred_region
      %s1573 = ssub.s32 %s14, 2
      // Predicated region
      $region65: #{lstm_model_forward.1} parent=63 // pred_check
        %p1574 = pneg %p232
      $region66: #{lstm_model_forward.1} parent=63 // pred_check_branch
        %1576 = sbr.rel (%p1574) target = $region68
      $region67: #{lstm_model_forward.1} parent=63 // pred_region
        %s1577 = smul.u32 4, %s26
        %p1578 = scmp.lt.s32.totalorder %s25, 0
        %s1579 = scalar_select %p1578, %s25, 0
        %p1580 = scmp.lt.s32.totalorder %s1577, 7
        %s1581 = scalar_select %p1580, %s1577, 7
        %s1582 = smul.addr %s1579, 8
        %s1583 = sadd.s32 %s1581, %s1582
        %s1584 = smul.addr %s1583, 8
        %s1585 = scalar_lea.vmem %s8, %s1584
      $region68: #{lstm_model_forward.1} parent=63 // pred_fallthru
        _
    $region64: #{lstm_model_forward.1} parent=5 // pred_fallthru
      _
  $region6: #{lstm_model_forward.1} parent=0 // loop_footer
    %s18 = sadd.s32 1, %s14
  $region7: #{lstm_model_forward.1} parent=0 // loop_footer_branch
    %13 = sbr.rel target = $region3
  $region8: #{lstm_model_forward.1} parent=0 // loop_exit
    _

</llo_original>
